<compile_context>
chip_gen: v6e
topology: v6e:2x2x1
jax: 0.10.0
libtpu: 0.0.40
codegen_flags: <defaults>
</compile_context>

<pallas_src>
import numpy as np
import jax
import jax.numpy as jnp
from jax.experimental import pallas as pl
from jax.experimental.pallas import tpu as pltpu

# ---- synthetic hparams (stand-in for the module's global `hparams`) --------
HIDDEN = 32          # hidden_size
NUM_HEADS = 2        # num_heads
KERNEL_SIZE = 9      # hparams['enc_ffn_kernel_size']
FFN_PADDING = "SAME"  # hparams['ffn_padding']
FFN_ACT = "gelu"     # hparams['ffn_act']  (exact erf-based GELU, as F.gelu)
NORM = "ln"
EPS = 1e-5           # nn.LayerNorm default eps
NEG_BIG = -1e30      # finite mask value (avoids NaN for fully-padded rows)


# ---------------------------- Pallas kernel --------------------------------
def enc_sa_layer_kernel(x_ref, keybias_ref, nonpad_ref,
                        g1_ref, b1_ref, g2_ref, b2_ref,
                        wqkv_ref, wo_ref, wc_ref, bc_ref, w2_ref, fb2_ref,
                        o_ref, conv_buf):
    f32, bf16 = jnp.float32, jnp.bfloat16
    BT, C = x_ref.shape                       # BT = BBLK * T (batch rows folded)
    BBLK, _, T = keybias_ref.shape
    _, S, _ = conv_buf.shape                  # S = T + 2*pad (per-batch padded)
    H = NUM_HEADS
    D = C // H
    KC, FF = wc_ref.shape
    K = KC // C
    pad = K // 2
    L = BBLK * S - 2 * pad                    # rows fed to the conv/FFN matmuls

    x = x_ref[...]                            # [BT, C] f32
    nonpad = nonpad_ref[...]                  # [BT, 1] f32 (1 - padding_mask)

    def ln(v, g_ref, b_ref):
        mu = jnp.mean(v, axis=-1, keepdims=True)
        var = jnp.mean((v - mu) ** 2, axis=-1, keepdims=True)
        return (v - mu) * jax.lax.rsqrt(var + EPS) * g_ref[...] + b_ref[...]

    # ---------------- self-attention sub-layer ----------------
    xn = ln(x, g1_ref, b1_ref).astype(bf16)                        # [BT, C]
    qkv = jnp.dot(xn, wqkv_ref[...], preferred_element_type=f32)   # [BT, 3C] f32
    qkv = qkv.astype(bf16).reshape(BBLK, T, 3 * C)                 # cast once
    keybias = keybias_ref[...]                                     # [BBLK, 1, T]

    head_outs = []
    for h in range(H):                                             # tiny static unroll
        qh = qkv[:, :, h * D:(h + 1) * D]
        kh = qkv[:, :, C + h * D:C + (h + 1) * D]
        vh = qkv[:, :, 2 * C + h * D:2 * C + (h + 1) * D]
        s = jnp.einsum('bqd,bkd->bqk', qh, kh,
                       preferred_element_type=f32)                 # [BBLK, T, T]
        s = s + keybias                                            # key-padding bias
        s = s - jnp.max(s, axis=-1, keepdims=True)
        p = jnp.exp(s)
        p = p * pl.reciprocal(jnp.sum(p, axis=-1, keepdims=True), approx=True)
        oh = jnp.einsum('bqk,bkd->bqd', p.astype(bf16), vh,
                        preferred_element_type=f32)                # [BBLK, T, D]
        head_outs.append(oh.astype(bf16))
    heads = jnp.concatenate(head_outs, axis=-1).reshape(BT, C)     # [BT, C] bf16
    attn = jnp.dot(heads, wo_ref[...], preferred_element_type=f32)  # single Wo matmul
    xb = (x + attn) * nonpad                                       # [BT, C] f32

    # ---------------- conv-FFN sub-layer (im2col, all batches in one slab) ---
    xn2 = ln(xb, g2_ref, b2_ref).astype(bf16)                      # [BT, C] bf16

    # Halo/gap rows must be zero every step (scratch is per-core and the grid
    # axis is "parallel"); valid rows are fully overwritten, so zero only halos.
    if pad > 0:
        conv_buf[:, :pad, :] = jnp.zeros((BBLK, pad, C), bf16)
        conv_buf[:, pad + T:, :] = jnp.zeros((BBLK, pad, C), bf16)
    conv_buf[:, pad:pad + T, :] = xn2.reshape(BBLK, T, C)

    slab = conv_buf[...].reshape(BBLK * S, C)                      # [BBLK*S, C] bf16
    im2col = jnp.concatenate([slab[kk:kk + L, :] for kk in range(K)],
                             axis=-1)                              # [L, K*C] bf16
    hid = jnp.dot(im2col, wc_ref[...], preferred_element_type=f32) + bc_ref[...]
    # exact GELU (matches torch.nn.functional.gelu default); K**-0.5 folded in wc/bc
    hid = 0.5 * hid * (1.0 + jax.lax.erf(hid * (2.0 ** -0.5)))
    y = jnp.dot(hid.astype(bf16), w2_ref[...],
                preferred_element_type=f32) + fb2_ref[...]          # [L, C]

    # extract valid rows (b*S aligned, T mult of 8) and write o_ref exactly once
    if BBLK == 1:
        y_valid = y[:T, :]
    else:
        y_valid = jnp.concatenate([y[b * S:b * S + T, :] for b in range(BBLK)],
                                  axis=0)
    o_ref[...] = (xb + y_valid) * nonpad


# ------------------------------ wrapper -------------------------------------
def _pick_bblk(B, T, target_rows=512):
    """Largest divisor of B with BBLK*T <= target_rows, keeping grid >= 2 steps
    (v7x megacore) whenever B allows it."""
    cand = [d for d in range(1, B + 1)
            if B % d == 0 and d * T <= target_rows and (B // d) >= 2]
    if not cand:
        cand = [d for d in range(1, B + 1) if B % d == 0 and d * T <= target_rows]
    return max(cand) if cand else 1


def transformer_encoder_layer(x_tbc, encoder_padding_mask, P, bblk=None):
    """x_tbc: [T, B, C] float32; encoder_padding_mask: [B, T] (1.0 = padded)."""
    T, B, C = x_tbc.shape
    KC, FF = P["wc_i2c"].shape
    K = KC // C
    pad = K // 2
    S = T + 2 * pad
    if bblk is None:
        bblk = _pick_bblk(B, T)
    assert B % bblk == 0
    BT = bblk * T

    x2 = jnp.transpose(x_tbc, (1, 0, 2)).astype(jnp.float32).reshape(B * T, C)
    m = encoder_padding_mask.astype(jnp.float32)
    keybias = jnp.where(m > 0.5, NEG_BIG, 0.0).astype(jnp.float32)[:, None, :]  # [B,1,T]
    nonpad = (1.0 - m).reshape(B * T, 1)

    def rep(shape):                       # grid-invariant (replicated) operand
        nd = len(shape)
        return pl.BlockSpec(shape, lambda i: (0,) * nd)

    # TODO(synk): C=32 (<128 lanes) keeps output stores masked; a lane-dense
    # [B, T*C] I/O layout would need a verified no-relayout in-kernel view.
    out2 = pl.pallas_call(
        enc_sa_layer_kernel,
        out_shape=jax.ShapeDtypeStruct((B * T, C), jnp.float32),
        grid=(B // bblk,),
        in_specs=[
            pl.BlockSpec((BT, C), lambda i: (i, 0)),          # x rows
            pl.BlockSpec((bblk, 1, T), lambda i: (i, 0, 0)),  # additive key bias
            pl.BlockSpec((BT, 1), lambda i: (i, 0)),          # (1 - mask)
            rep((1, C)), rep((1, C)), rep((1, C)), rep((1, C)),   # LN params
            rep((C, 3 * C)),                                      # fused Wqkv
            rep((C, C)),                                          # Wo
            rep((KC, FF)), rep((1, FF)),                          # im2col conv w/b
            rep((FF, C)), rep((1, C)),                            # ffn_2 w/b
        ],
        out_specs=pl.BlockSpec((BT, C), lambda i: (i, 0)),
        scratch_shapes=[pltpu.VMEM((bblk, S, C), jnp.bfloat16)],  # padded conv slab
        compiler_params=pltpu.CompilerParams(
            dimension_semantics=("parallel",),      # batch blocks shard across TCs
            vmem_limit_bytes=32 * 1024 * 1024),     # explicit; tiny footprint anyway
    )(x2, keybias, nonpad,
      P["g1"], P["b1"], P["g2"], P["b2"],
      P["wqkv"], P["wo_t"], P["wc_i2c"], P["b_conv"], P["w2_t"], P["bias2"])
    return jnp.transpose(out2.reshape(B, T, C), (1, 0, 2))


# -------------------- deterministic parameter init --------------------------
def init_params(key, C, H, K):
    D = C // H
    FF = 4 * C
    ks = jax.random.split(key, 12)
    n = lambda k, s, sc: sc * jax.random.normal(k, s, jnp.float32)
    g1 = 1.0 + 0.1 * jax.random.normal(ks[0], (1, C), jnp.float32)
    b1 = n(ks[1], (1, C), 0.1)
    g2 = 1.0 + 0.1 * jax.random.normal(ks[2], (1, C), jnp.float32)
    b2 = n(ks[3], (1, C), 0.1)
    # MHSA: in_proj (bias=False) split into q/k/v; out_proj (bias=False)
    wq = n(ks[4], (C, C), C ** -0.5)                   # torch layout [out, in]
    wk = n(ks[5], (C, C), C ** -0.5)
    wv = n(ks[6], (C, C), C ** -0.5)
    wo = n(ks[7], (C, C), C ** -0.5)
    # FFN: Conv1d(C, 4C, K, padding=K//2) + Linear(4C, C)
    w_conv = n(ks[8], (FF, C, K), (C * K) ** -0.5)     # torch layout [out, in, K]
    b_conv = n(ks[9], (1, FF), 0.1)
    w2 = n(ks[10], (C, FF), FF ** -0.5)                # torch layout [out, in]
    bias2 = n(ks[11], (1, C), 0.1)

    bf16 = jnp.bfloat16
    # fused QKV weight [C, 3C], q columns pre-scaled by D**-0.5
    wqkv = jnp.concatenate([wq.T * (D ** -0.5), wk.T, wv.T], axis=1)
    # im2col conv weight [K*C, 4C] with the K**-0.5 FFN scale folded in
    wc_i2c = jnp.transpose(w_conv, (2, 1, 0)).reshape(K * C, FF) * (K ** -0.5)
    return {
        "g1": g1, "b1": b1, "g2": g2, "b2": b2,
        "wqkv": wqkv.astype(bf16),
        "wo_t": wo.T.astype(bf16),
        "wc_i2c": wc_i2c.astype(bf16),
        "b_conv": b_conv * (K ** -0.5),
        "w2_t": w2.T.astype(bf16),
        "bias2": bias2,
    }


# ---------------------- pure-JAX reference (for checking) -------------------
def reference_forward(x_tbc, pad_mask, P):
    T, B, C = x_tbc.shape
    KC, FF = P["wc_i2c"].shape
    K = KC // C
    pad = K // 2
    H = NUM_HEADS
    D = C // H
    bf16, f32 = jnp.bfloat16, jnp.float32

    x = jnp.transpose(x_tbc, (1, 0, 2)).astype(f32)                # [B,T,C]
    keybias = jnp.where(pad_mask > 0.5, NEG_BIG, 0.0)[:, None, :]  # [B,1,T]
    nonpad = (1.0 - pad_mask)[:, :, None]

    def ln(v, g, b):
        mu = jnp.mean(v, -1, keepdims=True)
        var = jnp.mean((v - mu) ** 2, -1, keepdims=True)
        return (v - mu) * jax.lax.rsqrt(var + EPS) * g + b

    res = x
    xn = ln(x, P["g1"], P["b1"]).astype(bf16)
    qkv = jnp.einsum("btc,cd->btd", xn, P["wqkv"],
                     preferred_element_type=f32).astype(bf16)      # [B,T,3C]
    heads = []
    for h in range(H):
        q = qkv[:, :, h * D:(h + 1) * D]
        k = qkv[:, :, C + h * D:C + (h + 1) * D]
        v = qkv[:, :, 2 * C + h * D:2 * C + (h + 1) * D]
        s = jnp.einsum("bqd,bkd->bqk", q, k, preferred_element_type=f32) + keybias
        s = s - jnp.max(s, -1, keepdims=True)
        p = jnp.exp(s)
        p = p / jnp.sum(p, -1, keepdims=True)
        heads.append(jnp.einsum("bqk,bkd->bqd", p.astype(bf16), v,
                                preferred_element_type=f32).astype(bf16))
    attn = jnp.einsum("btd,dc->btc", jnp.concatenate(heads, -1), P["wo_t"],
                      preferred_element_type=f32)
    x = (res + attn) * nonpad

    res = x
    xn2 = ln(x, P["g2"], P["b2"]).astype(bf16)
    xp = jnp.pad(xn2, ((0, 0), (pad, pad), (0, 0)))
    wc3 = P["wc_i2c"].reshape(K, C, FF)
    hid = jnp.zeros((B, T, FF), f32)
    for kk in range(K):
        hid = hid + jnp.einsum("btc,cf->btf", xp[:, kk:kk + T, :], wc3[kk],
                               preferred_element_type=f32)
    hid = hid + P["b_conv"]
    hid = 0.5 * hid * (1.0 + jax.lax.erf(hid * (2.0 ** -0.5)))
    y = jnp.einsum("btf,fc->btc", hid.astype(bf16), P["w2_t"],
                   preferred_element_type=f32) + P["bias2"]
    x = (res + y) * nonpad
    return jnp.transpose(x, (1, 0, 2))


if __name__ == "__main__":
    T, B, C = 16, 2, HIDDEN
    key = jax.random.PRNGKey(0)
    kx, kp = jax.random.split(key)

    x = jax.random.normal(kx, (T, B, C), jnp.float32)          # [T, B, C]
    mask_np = np.zeros((B, T), np.float32)
    mask_np[1, 13:] = 1.0                                       # pad tail of batch 1
    encoder_padding_mask = jnp.asarray(mask_np)                 # [B, T]

    P = init_params(kp, C, NUM_HEADS, KERNEL_SIZE)

    out = jax.block_until_ready(transformer_encoder_layer(x, encoder_padding_mask, P))
    ref = jax.block_until_ready(reference_forward(x, encoder_padding_mask, P))

    assert out.shape == (T, B, C)
    # bf16 MXU inputs + approx softmax reciprocal -> slightly looser tolerance
    np.testing.assert_allclose(np.asarray(out), np.asarray(ref),
                               atol=1e-2, rtol=1e-2)
    print("KERNEL_OK")
</pallas_src>

<mosaic_0001>
module attributes {stable_mosaic.version = 11 : i64} {
  func.func @enc_sa_layer_kernel(%arg0: i32, %arg1: memref<16x32xf32, #tpu.memory_space<vmem>>, %arg2: memref<1x1x16xf32, #tpu.memory_space<vmem>>, %arg3: memref<16x1xf32, #tpu.memory_space<vmem>>, %arg4: memref<1x32xf32, #tpu.memory_space<vmem>>, %arg5: memref<1x32xf32, #tpu.memory_space<vmem>>, %arg6: memref<1x32xf32, #tpu.memory_space<vmem>>, %arg7: memref<1x32xf32, #tpu.memory_space<vmem>>, %arg8: memref<32x96xbf16, #tpu.memory_space<vmem>>, %arg9: memref<32x32xbf16, #tpu.memory_space<vmem>>, %arg10: memref<288x128xbf16, #tpu.memory_space<vmem>>, %arg11: memref<1x128xf32, #tpu.memory_space<vmem>>, %arg12: memref<128x32xbf16, #tpu.memory_space<vmem>>, %arg13: memref<1x32xf32, #tpu.memory_space<vmem>>, %arg14: memref<16x32xf32, #tpu.memory_space<vmem>>, %arg15: memref<1x24x32xbf16, #tpu.memory_space<vmem>>) attributes {dimension_semantics = [#tpu.dimension_semantics<parallel>], iteration_bounds = array<i64: 2>, scalar_prefetch = 0 : i64, scratch_operands = 1 : i64, tpu.core_type = #tpu.core_type<tc>, window_params = [{transform_indices = @transform_0, window_bounds = array<i64: 16, 32>}, {transform_indices = @transform_1, window_bounds = array<i64: 1, 1, 16>}, {transform_indices = @transform_2, window_bounds = array<i64: 16, 1>}, {pipeline_mode = #tpu.pipeline_mode<synchronous>, transform_indices = @transform_3, window_bounds = array<i64: 1, 32>}, {pipeline_mode = #tpu.pipeline_mode<synchronous>, transform_indices = @transform_4, window_bounds = array<i64: 1, 32>}, {pipeline_mode = #tpu.pipeline_mode<synchronous>, transform_indices = @transform_5, window_bounds = array<i64: 1, 32>}, {pipeline_mode = #tpu.pipeline_mode<synchronous>, transform_indices = @transform_6, window_bounds = array<i64: 1, 32>}, {pipeline_mode = #tpu.pipeline_mode<synchronous>, transform_indices = @transform_7, window_bounds = array<i64: 32, 96>}, {pipeline_mode = #tpu.pipeline_mode<synchronous>, transform_indices = @transform_8, window_bounds = array<i64: 32, 32>}, {pipeline_mode = #tpu.pipeline_mode<synchronous>, transform_indices = @transform_9, window_bounds = array<i64: 288, 128>}, {pipeline_mode = #tpu.pipeline_mode<synchronous>, transform_indices = @transform_10, window_bounds = array<i64: 1, 128>}, {pipeline_mode = #tpu.pipeline_mode<synchronous>, transform_indices = @transform_11, window_bounds = array<i64: 128, 32>}, {pipeline_mode = #tpu.pipeline_mode<synchronous>, transform_indices = @transform_12, window_bounds = array<i64: 1, 32>}, {transform_indices = @transform_13, window_bounds = array<i64: 16, 32>}]} {
    %c0 = arith.constant 0 : index
    %c0_0 = arith.constant 0 : index
    %0 = vector.load %arg1[%c0, %c0_0] : memref<16x32xf32, #tpu.memory_space<vmem>>, vector<16x32xf32>
    %c0_1 = arith.constant 0 : index
    %c0_2 = arith.constant 0 : index
    %1 = vector.load %arg3[%c0_1, %c0_2] : memref<16x1xf32, #tpu.memory_space<vmem>>, vector<16x1xf32>
    %cst = arith.constant dense<0.000000e+00> : vector<16xf32>
    %2 = vector.multi_reduction <add>, %0, %cst [1] : vector<16x32xf32> to vector<16xf32>
    %3 = vector.shape_cast %2 : vector<16xf32> to vector<16x1xf32>
    %cst_3 = arith.constant 3.200000e+01 : f32
    %4 = vector.broadcast %cst_3 : f32 to vector<16x1xf32>
    %5 = arith.divf %3, %4 : vector<16x1xf32>
    %6 = vector.broadcast %5 : vector<16x1xf32> to vector<16x32xf32>
    %7 = arith.subf %0, %6 : vector<16x32xf32>
    %8 = arith.mulf %7, %7 : vector<16x32xf32>
    %cst_4 = arith.constant dense<0.000000e+00> : vector<16xf32>
    %9 = vector.multi_reduction <add>, %8, %cst_4 [1] : vector<16x32xf32> to vector<16xf32>
    %10 = vector.shape_cast %9 : vector<16xf32> to vector<16x1xf32>
    %cst_5 = arith.constant 3.200000e+01 : f32
    %11 = vector.broadcast %cst_5 : f32 to vector<16x1xf32>
    %12 = arith.divf %10, %11 : vector<16x1xf32>
    %13 = vector.broadcast %5 : vector<16x1xf32> to vector<16x32xf32>
    %14 = arith.subf %0, %13 : vector<16x32xf32>
    %cst_6 = arith.constant 9.99999974E-6 : f32
    %15 = vector.broadcast %cst_6 : f32 to vector<16x1xf32>
    %16 = arith.addf %12, %15 : vector<16x1xf32>
    %17 = math.rsqrt %16 : vector<16x1xf32>
    %18 = vector.broadcast %17 : vector<16x1xf32> to vector<16x32xf32>
    %19 = arith.mulf %14, %18 : vector<16x32xf32>
    %c0_7 = arith.constant 0 : index
    %c0_8 = arith.constant 0 : index
    %20 = vector.load %arg4[%c0_7, %c0_8] : memref<1x32xf32, #tpu.memory_space<vmem>>, vector<1x32xf32>
    %21 = vector.broadcast %20 : vector<1x32xf32> to vector<16x32xf32>
    %22 = arith.mulf %19, %21 : vector<16x32xf32>
    %c0_9 = arith.constant 0 : index
    %c0_10 = arith.constant 0 : index
    %23 = vector.load %arg5[%c0_9, %c0_10] : memref<1x32xf32, #tpu.memory_space<vmem>>, vector<1x32xf32>
    %24 = vector.broadcast %23 : vector<1x32xf32> to vector<16x32xf32>
    %25 = arith.addf %22, %24 : vector<16x32xf32>
    %26 = arith.truncf %25 : vector<16x32xf32> to vector<16x32xbf16>
    %c0_11 = arith.constant 0 : index
    %c0_12 = arith.constant 0 : index
    %27 = vector.load %arg8[%c0_11, %c0_12] : memref<32x96xbf16, #tpu.memory_space<vmem>>, vector<32x96xbf16>
    %cst_13 = arith.constant dense<0.000000e+00> : vector<16x96xf32>
    %28 = tpu.matmul %26, %27, %cst_13 {dimension_numbers = #tpu.dot_dimension_numbers<[1], [0], [0], [1], [0, 0, 1, 1], [], []>} : vector<16x32xbf16>, vector<32x96xbf16>, vector<16x96xf32> -> vector<16x96xf32>
    %29 = arith.truncf %28 : vector<16x96xf32> to vector<16x96xbf16>
    %30 = vector.shape_cast %29 : vector<16x96xbf16> to vector<1x16x96xbf16>
    %c0_14 = arith.constant 0 : index
    %c0_15 = arith.constant 0 : index
    %c0_16 = arith.constant 0 : index
    %31 = vector.load %arg2[%c0_14, %c0_15, %c0_16] : memref<1x1x16xf32, #tpu.memory_space<vmem>>, vector<1x1x16xf32>
    %32 = vector.extract_strided_slice %30 {offsets = [0, 0, 0], sizes = [1, 16, 16], strides = [1, 1, 1]} : vector<1x16x96xbf16> to vector<1x16x16xbf16>
    %33 = vector.extract_strided_slice %30 {offsets = [0, 0, 32], sizes = [1, 16, 16], strides = [1, 1, 1]} : vector<1x16x96xbf16> to vector<1x16x16xbf16>
    %34 = vector.extract_strided_slice %30 {offsets = [0, 0, 64], sizes = [1, 16, 16], strides = [1, 1, 1]} : vector<1x16x96xbf16> to vector<1x16x16xbf16>
    "tpu.trace_start"() <{level = 10 : i32, message = "bqd,bkd->bqk"}> : () -> ()
    %cst_17 = arith.constant dense<0.000000e+00> : vector<1x16x16xf32>
    %35 = tpu.matmul %32, %33, %cst_17 {dimension_numbers = #tpu.dot_dimension_numbers<[2], [2], [1], [1], [0, 0, 0, 1, 1, 1], [0], [0]>} : vector<1x16x16xbf16>, vector<1x16x16xbf16>, vector<1x16x16xf32> -> vector<1x16x16xf32>
    "tpu.trace_stop"() : () -> ()
    %36 = vector.broadcast %31 : vector<1x1x16xf32> to vector<1x16x16xf32>
    %37 = arith.addf %35, %36 : vector<1x16x16xf32>
    %cst_18 = arith.constant dense<0xFF800000> : vector<1x16xf32>
    %38 = vector.multi_reduction <maximumf>, %37, %cst_18 [2] : vector<1x16x16xf32> to vector<1x16xf32>
    %39 = vector.shape_cast %38 : vector<1x16xf32> to vector<1x16x1xf32>
    %40 = vector.broadcast %39 : vector<1x16x1xf32> to vector<1x16x16xf32>
    %41 = arith.subf %37, %40 : vector<1x16x16xf32>
    %42 = math.exp %41 : vector<1x16x16xf32>
    %cst_19 = arith.constant dense<0.000000e+00> : vector<1x16xf32>
    %43 = vector.multi_reduction <add>, %42, %cst_19 [2] : vector<1x16x16xf32> to vector<1x16xf32>
    %44 = vector.shape_cast %43 : vector<1x16xf32> to vector<1x16x1xf32>
    %45 = tpu.reciprocal %44 {approx = true} : vector<1x16x1xf32> -> vector<1x16x1xf32>
    %46 = vector.broadcast %45 : vector<1x16x1xf32> to vector<1x16x16xf32>
    %47 = arith.mulf %42, %46 : vector<1x16x16xf32>
    %48 = arith.truncf %47 : vector<1x16x16xf32> to vector<1x16x16xbf16>
    "tpu.trace_start"() <{level = 10 : i32, message = "bqk,bkd->bqd"}> : () -> ()
    %cst_20 = arith.constant dense<0.000000e+00> : vector<1x16x16xf32>
    %49 = tpu.matmul %48, %34, %cst_20 {dimension_numbers = #tpu.dot_dimension_numbers<[2], [1], [1], [2], [0, 0, 0, 1, 1, 2], [0], [0]>} : vector<1x16x16xbf16>, vector<1x16x16xbf16>, vector<1x16x16xf32> -> vector<1x16x16xf32>
    "tpu.trace_stop"() : () -> ()
    %50 = arith.truncf %49 : vector<1x16x16xf32> to vector<1x16x16xbf16>
    %51 = vector.extract_strided_slice %30 {offsets = [0, 0, 16], sizes = [1, 16, 16], strides = [1, 1, 1]} : vector<1x16x96xbf16> to vector<1x16x16xbf16>
    %52 = vector.extract_strided_slice %30 {offsets = [0, 0, 48], sizes = [1, 16, 16], strides = [1, 1, 1]} : vector<1x16x96xbf16> to vector<1x16x16xbf16>
    %53 = vector.extract_strided_slice %30 {offsets = [0, 0, 80], sizes = [1, 16, 16], strides = [1, 1, 1]} : vector<1x16x96xbf16> to vector<1x16x16xbf16>
    "tpu.trace_start"() <{level = 10 : i32, message = "bqd,bkd->bqk"}> : () -> ()
    %cst_21 = arith.constant dense<0.000000e+00> : vector<1x16x16xf32>
    %54 = tpu.matmul %51, %52, %cst_21 {dimension_numbers = #tpu.dot_dimension_numbers<[2], [2], [1], [1], [0, 0, 0, 1, 1, 1], [0], [0]>} : vector<1x16x16xbf16>, vector<1x16x16xbf16>, vector<1x16x16xf32> -> vector<1x16x16xf32>
    "tpu.trace_stop"() : () -> ()
    %55 = vector.broadcast %31 : vector<1x1x16xf32> to vector<1x16x16xf32>
    %56 = arith.addf %54, %55 : vector<1x16x16xf32>
    %cst_22 = arith.constant dense<0xFF800000> : vector<1x16xf32>
    %57 = vector.multi_reduction <maximumf>, %56, %cst_22 [2] : vector<1x16x16xf32> to vector<1x16xf32>
    %58 = vector.shape_cast %57 : vector<1x16xf32> to vector<1x16x1xf32>
    %59 = vector.broadcast %58 : vector<1x16x1xf32> to vector<1x16x16xf32>
    %60 = arith.subf %56, %59 : vector<1x16x16xf32>
    %61 = math.exp %60 : vector<1x16x16xf32>
    %cst_23 = arith.constant dense<0.000000e+00> : vector<1x16xf32>
    %62 = vector.multi_reduction <add>, %61, %cst_23 [2] : vector<1x16x16xf32> to vector<1x16xf32>
    %63 = vector.shape_cast %62 : vector<1x16xf32> to vector<1x16x1xf32>
    %64 = tpu.reciprocal %63 {approx = true} : vector<1x16x1xf32> -> vector<1x16x1xf32>
    %65 = vector.broadcast %64 : vector<1x16x1xf32> to vector<1x16x16xf32>
    %66 = arith.mulf %61, %65 : vector<1x16x16xf32>
    %67 = arith.truncf %66 : vector<1x16x16xf32> to vector<1x16x16xbf16>
    "tpu.trace_start"() <{level = 10 : i32, message = "bqk,bkd->bqd"}> : () -> ()
    %cst_24 = arith.constant dense<0.000000e+00> : vector<1x16x16xf32>
    %68 = tpu.matmul %67, %53, %cst_24 {dimension_numbers = #tpu.dot_dimension_numbers<[2], [1], [1], [2], [0, 0, 0, 1, 1, 2], [0], [0]>} : vector<1x16x16xbf16>, vector<1x16x16xbf16>, vector<1x16x16xf32> -> vector<1x16x16xf32>
    "tpu.trace_stop"() : () -> ()
    %69 = arith.truncf %68 : vector<1x16x16xf32> to vector<1x16x16xbf16>
    %70 = tpu.concatenate %50, %69 in 2 : vector<1x16x16xbf16>, vector<1x16x16xbf16> -> vector<1x16x32xbf16>
    %71 = vector.shape_cast %70 : vector<1x16x32xbf16> to vector<16x32xbf16>
    %c0_25 = arith.constant 0 : index
    %c0_26 = arith.constant 0 : index
    %72 = vector.load %arg9[%c0_25, %c0_26] : memref<32x32xbf16, #tpu.memory_space<vmem>>, vector<32x32xbf16>
    %cst_27 = arith.constant dense<0.000000e+00> : vector<16x32xf32>
    %73 = tpu.matmul %71, %72, %cst_27 {dimension_numbers = #tpu.dot_dimension_numbers<[1], [0], [0], [1], [0, 0, 1, 1], [], []>} : vector<16x32xbf16>, vector<32x32xbf16>, vector<16x32xf32> -> vector<16x32xf32>
    %74 = arith.addf %0, %73 : vector<16x32xf32>
    %75 = vector.broadcast %1 : vector<16x1xf32> to vector<16x32xf32>
    %76 = arith.mulf %74, %75 : vector<16x32xf32>
    %cst_28 = arith.constant dense<0.000000e+00> : vector<16xf32>
    %77 = vector.multi_reduction <add>, %76, %cst_28 [1] : vector<16x32xf32> to vector<16xf32>
    %78 = vector.shape_cast %77 : vector<16xf32> to vector<16x1xf32>
    %cst_29 = arith.constant 3.200000e+01 : f32
    %79 = vector.broadcast %cst_29 : f32 to vector<16x1xf32>
    %80 = arith.divf %78, %79 : vector<16x1xf32>
    %81 = vector.broadcast %80 : vector<16x1xf32> to vector<16x32xf32>
    %82 = arith.subf %76, %81 : vector<16x32xf32>
    %83 = arith.mulf %82, %82 : vector<16x32xf32>
    %cst_30 = arith.constant dense<0.000000e+00> : vector<16xf32>
    %84 = vector.multi_reduction <add>, %83, %cst_30 [1] : vector<16x32xf32> to vector<16xf32>
    %85 = vector.shape_cast %84 : vector<16xf32> to vector<16x1xf32>
    %cst_31 = arith.constant 3.200000e+01 : f32
    %86 = vector.broadcast %cst_31 : f32 to vector<16x1xf32>
    %87 = arith.divf %85, %86 : vector<16x1xf32>
    %88 = vector.broadcast %80 : vector<16x1xf32> to vector<16x32xf32>
    %89 = arith.subf %76, %88 : vector<16x32xf32>
    %cst_32 = arith.constant 9.99999974E-6 : f32
    %90 = vector.broadcast %cst_32 : f32 to vector<16x1xf32>
    %91 = arith.addf %87, %90 : vector<16x1xf32>
    %92 = math.rsqrt %91 : vector<16x1xf32>
    %93 = vector.broadcast %92 : vector<16x1xf32> to vector<16x32xf32>
    %94 = arith.mulf %89, %93 : vector<16x32xf32>
    %c0_33 = arith.constant 0 : index
    %c0_34 = arith.constant 0 : index
    %95 = vector.load %arg6[%c0_33, %c0_34] : memref<1x32xf32, #tpu.memory_space<vmem>>, vector<1x32xf32>
    %96 = vector.broadcast %95 : vector<1x32xf32> to vector<16x32xf32>
    %97 = arith.mulf %94, %96 : vector<16x32xf32>
    %c0_35 = arith.constant 0 : index
    %c0_36 = arith.constant 0 : index
    %98 = vector.load %arg7[%c0_35, %c0_36] : memref<1x32xf32, #tpu.memory_space<vmem>>, vector<1x32xf32>
    %99 = vector.broadcast %98 : vector<1x32xf32> to vector<16x32xf32>
    %100 = arith.addf %97, %99 : vector<16x32xf32>
    %101 = arith.truncf %100 : vector<16x32xf32> to vector<16x32xbf16>
    %cst_37 = arith.constant 0.000000e+00 : bf16
    %102 = vector.broadcast %cst_37 : bf16 to vector<1x4x32xbf16>
    %c0_38 = arith.constant 0 : index
    %c0_39 = arith.constant 0 : index
    %c0_40 = arith.constant 0 : index
    %103 = vector.load %arg15[%c0_38, %c0_39, %c0_40] : memref<1x24x32xbf16, #tpu.memory_space<vmem>>, vector<1x4x32xbf16>
    tpu.vector_store %arg15[%c0_38, %c0_39, %c0_40], %102 {strides = array<i32>} : memref<1x24x32xbf16, #tpu.memory_space<vmem>>, vector<1x4x32xbf16>,
    %cst_41 = arith.constant 0.000000e+00 : bf16
    %104 = vector.broadcast %cst_41 : bf16 to vector<1x4x32xbf16>
    %c0_42 = arith.constant 0 : index
    %c20 = arith.constant 20 : index
    %c0_43 = arith.constant 0 : index
    %105 = vector.load %arg15[%c0_42, %c20, %c0_43] : memref<1x24x32xbf16, #tpu.memory_space<vmem>>, vector<1x4x32xbf16>
    tpu.vector_store %arg15[%c0_42, %c20, %c0_43], %104 {strides = array<i32>} : memref<1x24x32xbf16, #tpu.memory_space<vmem>>, vector<1x4x32xbf16>,
    %106 = vector.shape_cast %101 : vector<16x32xbf16> to vector<1x16x32xbf16>
    %c0_44 = arith.constant 0 : index
    %c4 = arith.constant 4 : index
    %c0_45 = arith.constant 0 : index
    %107 = vector.load %arg15[%c0_44, %c4, %c0_45] : memref<1x24x32xbf16, #tpu.memory_space<vmem>>, vector<1x16x32xbf16>
    tpu.vector_store %arg15[%c0_44, %c4, %c0_45], %106 {strides = array<i32>} : memref<1x24x32xbf16, #tpu.memory_space<vmem>>, vector<1x16x32xbf16>,
    %c0_46 = arith.constant 0 : index
    %c0_47 = arith.constant 0 : index
    %c0_48 = arith.constant 0 : index
    %108 = vector.load %arg15[%c0_46, %c0_47, %c0_48] : memref<1x24x32xbf16, #tpu.memory_space<vmem>>, vector<1x24x32xbf16>
    %109 = vector.shape_cast %108 : vector<1x24x32xbf16> to vector<24x32xbf16>
    %110 = vector.extract_strided_slice %109 {offsets = [0, 0], sizes = [16, 32], strides = [1, 1]} : vector<24x32xbf16> to vector<16x32xbf16>
    %111 = vector.extract_strided_slice %109 {offsets = [1, 0], sizes = [16, 32], strides = [1, 1]} : vector<24x32xbf16> to vector<16x32xbf16>
    %112 = vector.extract_strided_slice %109 {offsets = [2, 0], sizes = [16, 32], strides = [1, 1]} : vector<24x32xbf16> to vector<16x32xbf16>
    %113 = vector.extract_strided_slice %109 {offsets = [3, 0], sizes = [16, 32], strides = [1, 1]} : vector<24x32xbf16> to vector<16x32xbf16>
    %114 = vector.extract_strided_slice %109 {offsets = [4, 0], sizes = [16, 32], strides = [1, 1]} : vector<24x32xbf16> to vector<16x32xbf16>
    %115 = vector.extract_strided_slice %109 {offsets = [5, 0], sizes = [16, 32], strides = [1, 1]} : vector<24x32xbf16> to vector<16x32xbf16>
    %116 = vector.extract_strided_slice %109 {offsets = [6, 0], sizes = [16, 32], strides = [1, 1]} : vector<24x32xbf16> to vector<16x32xbf16>
    %117 = vector.extract_strided_slice %109 {offsets = [7, 0], sizes = [16, 32], strides = [1, 1]} : vector<24x32xbf16> to vector<16x32xbf16>
    %118 = vector.extract_strided_slice %109 {offsets = [8, 0], sizes = [16, 32], strides = [1, 1]} : vector<24x32xbf16> to vector<16x32xbf16>
    %119 = tpu.concatenate %110, %111, %112, %113, %114, %115, %116, %117, %118 in 1 : vector<16x32xbf16>, vector<16x32xbf16>, vector<16x32xbf16>, vector<16x32xbf16>, vector<16x32xbf16>, vector<16x32xbf16>, vector<16x32xbf16>, vector<16x32xbf16>, vector<16x32xbf16> -> vector<16x288xbf16>
    %c0_49 = arith.constant 0 : index
    %c0_50 = arith.constant 0 : index
    %120 = vector.load %arg10[%c0_49, %c0_50] : memref<288x128xbf16, #tpu.memory_space<vmem>>, vector<288x128xbf16>
    %cst_51 = arith.constant dense<0.000000e+00> : vector<16x128xf32>
    %121 = tpu.matmul %119, %120, %cst_51 {dimension_numbers = #tpu.dot_dimension_numbers<[1], [0], [0], [1], [0, 0, 1, 1], [], []>} : vector<16x288xbf16>, vector<288x128xbf16>, vector<16x128xf32> -> vector<16x128xf32>
    %c0_52 = arith.constant 0 : index
    %c0_53 = arith.constant 0 : index
    %122 = vector.load %arg11[%c0_52, %c0_53] : memref<1x128xf32, #tpu.memory_space<vmem>>, vector<1x128xf32>
    %123 = vector.broadcast %122 : vector<1x128xf32> to vector<16x128xf32>
    %124 = arith.addf %121, %123 : vector<16x128xf32>
    %cst_54 = arith.constant 5.000000e-01 : f32
    %125 = vector.broadcast %cst_54 : f32 to vector<16x128xf32>
    %126 = arith.mulf %125, %124 : vector<16x128xf32>
    %cst_55 = arith.constant 0.707106769 : f32
    %127 = vector.broadcast %cst_55 : f32 to vector<16x128xf32>
    %128 = arith.mulf %124, %127 : vector<16x128xf32>
    %129 = math.erf %128 : vector<16x128xf32>
    %cst_56 = arith.constant 1.000000e+00 : f32
    %130 = vector.broadcast %cst_56 : f32 to vector<16x128xf32>
    %131 = arith.addf %130, %129 : vector<16x128xf32>
    %132 = arith.mulf %126, %131 : vector<16x128xf32>
    %133 = arith.truncf %132 : vector<16x128xf32> to vector<16x128xbf16>
    %c0_57 = arith.constant 0 : index
    %c0_58 = arith.constant 0 : index
    %134 = vector.load %arg12[%c0_57, %c0_58] : memref<128x32xbf16, #tpu.memory_space<vmem>>, vector<128x32xbf16>
    %cst_59 = arith.constant dense<0.000000e+00> : vector<16x32xf32>
    %135 = tpu.matmul %133, %134, %cst_59 {dimension_numbers = #tpu.dot_dimension_numbers<[1], [0], [0], [1], [0, 0, 1, 1], [], []>} : vector<16x128xbf16>, vector<128x32xbf16>, vector<16x32xf32> -> vector<16x32xf32>
    %c0_60 = arith.constant 0 : index
    %c0_61 = arith.constant 0 : index
    %136 = vector.load %arg13[%c0_60, %c0_61] : memref<1x32xf32, #tpu.memory_space<vmem>>, vector<1x32xf32>
    %137 = vector.broadcast %136 : vector<1x32xf32> to vector<16x32xf32>
    %138 = arith.addf %135, %137 : vector<16x32xf32>
    %139 = arith.addf %76, %138 : vector<16x32xf32>
    %140 = vector.broadcast %1 : vector<16x1xf32> to vector<16x32xf32>
    %141 = arith.mulf %139, %140 : vector<16x32xf32>
    %c0_62 = arith.constant 0 : index
    %c0_63 = arith.constant 0 : index
    %142 = vector.load %arg14[%c0_62, %c0_63] : memref<16x32xf32, #tpu.memory_space<vmem>>, vector<16x32xf32>
    tpu.vector_store %arg14[%c0_62, %c0_63], %141 {strides = array<i32>} : memref<16x32xf32, #tpu.memory_space<vmem>>, vector<16x32xf32>,
    return
  }
  func.func @transform_0(%arg0: i32) -> (i32, i32) {
    %c0_i32 = arith.constant 0 : i32
    %c0_i32_0 = arith.constant 0 : i32
    return %arg0, %c0_i32 : i32, i32
  }
  func.func @transform_1(%arg0: i32) -> (i32, i32, i32) {
    %c0_i32 = arith.constant 0 : i32
    %c0_i32_0 = arith.constant 0 : i32
    %c0_i32_1 = arith.constant 0 : i32
    return %arg0, %c0_i32, %c0_i32_0 : i32, i32, i32
  }
  func.func @transform_2(%arg0: i32) -> (i32, i32) {
    %c0_i32 = arith.constant 0 : i32
    %c0_i32_0 = arith.constant 0 : i32
    return %arg0, %c0_i32 : i32, i32
  }
  func.func @transform_3(%arg0: i32) -> (i32, i32) {
    %c0_i32 = arith.constant 0 : i32
    %c0_i32_0 = arith.constant 0 : i32
    %c0_i32_1 = arith.constant 0 : i32
    return %c0_i32, %c0_i32_0 : i32, i32
  }
  func.func @transform_4(%arg0: i32) -> (i32, i32) {
    %c0_i32 = arith.constant 0 : i32
    %c0_i32_0 = arith.constant 0 : i32
    %c0_i32_1 = arith.constant 0 : i32
    return %c0_i32, %c0_i32_0 : i32, i32
  }
  func.func @transform_5(%arg0: i32) -> (i32, i32) {
    %c0_i32 = arith.constant 0 : i32
    %c0_i32_0 = arith.constant 0 : i32
    %c0_i32_1 = arith.constant 0 : i32
    return %c0_i32, %c0_i32_0 : i32, i32
  }
  func.func @transform_6(%arg0: i32) -> (i32, i32) {
    %c0_i32 = arith.constant 0 : i32
    %c0_i32_0 = arith.constant 0 : i32
    %c0_i32_1 = arith.constant 0 : i32
    return %c0_i32, %c0_i32_0 : i32, i32
  }
  func.func @transform_7(%arg0: i32) -> (i32, i32) {
    %c0_i32 = arith.constant 0 : i32
    %c0_i32_0 = arith.constant 0 : i32
    %c0_i32_1 = arith.constant 0 : i32
    return %c0_i32, %c0_i32_0 : i32, i32
  }
  func.func @transform_8(%arg0: i32) -> (i32, i32) {
    %c0_i32 = arith.constant 0 : i32
    %c0_i32_0 = arith.constant 0 : i32
    %c0_i32_1 = arith.constant 0 : i32
    return %c0_i32, %c0_i32_0 : i32, i32
  }
  func.func @transform_9(%arg0: i32) -> (i32, i32) {
    %c0_i32 = arith.constant 0 : i32
    %c0_i32_0 = arith.constant 0 : i32
    %c0_i32_1 = arith.constant 0 : i32
    return %c0_i32, %c0_i32_0 : i32, i32
  }
  func.func @transform_10(%arg0: i32) -> (i32, i32) {
    %c0_i32 = arith.constant 0 : i32
    %c0_i32_0 = arith.constant 0 : i32
    %c0_i32_1 = arith.constant 0 : i32
    return %c0_i32, %c0_i32_0 : i32, i32
  }
  func.func @transform_11(%arg0: i32) -> (i32, i32) {
    %c0_i32 = arith.constant 0 : i32
    %c0_i32_0 = arith.constant 0 : i32
    %c0_i32_1 = arith.constant 0 : i32
    return %c0_i32, %c0_i32_0 : i32, i32
  }
  func.func @transform_12(%arg0: i32) -> (i32, i32) {
    %c0_i32 = arith.constant 0 : i32
    %c0_i32_0 = arith.constant 0 : i32
    %c0_i32_1 = arith.constant 0 : i32
    return %c0_i32, %c0_i32_0 : i32, i32
  }
  func.func @transform_13(%arg0: i32) -> (i32, i32) {
    %c0_i32 = arith.constant 0 : i32
    %c0_i32_0 = arith.constant 0 : i32
    return %arg0, %c0_i32 : i32, i32
  }
}

</mosaic_0001>

<llo_original>
// kernel: tpu_custom_call.1
$region0: #{tpu_custom_call.1}
  #allocation0 [shape = 'u32[]', space=smem, size = 0x4, offset = 0x4, fixed_abs, tag = 'smem constant byte address 0x4 - core index']
  #allocation1 [shape = 'u32[144,128]{1,0:T(1,128)}', space=vmem, size = 0x12000, scoped, tag = 'internal scratch']
  #allocation2 [shape = 'bf16[1,24,32]{2,1,0:T(8,128)(2,1)}', space=vmem, size = 0x1800, scoped, tag = 'scratch operand']
  %s0 = inlined_call_operand.vmem [shape: f32[32,32], index: 0, kind: input, shape index: {}]
  %s1 = inlined_call_operand.vmem [shape: f32[2,1,16], index: 1, kind: input, shape index: {}]
  %s2 = inlined_call_operand.vmem [shape: f32[32,1], index: 2, kind: input, shape index: {}]
  %s3 = inlined_call_operand.vmem [shape: f32[1,32], index: 3, kind: input, shape index: {}]
  %s4 = inlined_call_operand.vmem [shape: f32[1,32], index: 4, kind: input, shape index: {}]
  %s5 = inlined_call_operand.vmem [shape: f32[1,32], index: 5, kind: input, shape index: {}]
  %s6 = inlined_call_operand.vmem [shape: f32[1,32], index: 6, kind: input, shape index: {}]
  %s7 = inlined_call_operand.vmem [shape: bf16[32,96], index: 7, kind: input, shape index: {}]
  %s8 = inlined_call_operand.vmem [shape: bf16[32,32], index: 8, kind: input, shape index: {}]
  %s9 = inlined_call_operand.hbm [shape: bf16[288,128], index: 9, kind: input, shape index: {}]
  %s10 = inlined_call_operand.vmem [shape: f32[1,128], index: 10, kind: input, shape index: {}]
  %s11 = inlined_call_operand.vmem [shape: bf16[128,32], index: 11, kind: input, shape index: {}]
  %s12 = inlined_call_operand.vmem [shape: f32[1,32], index: 12, kind: input, shape index: {}]
  %s13 = inlined_call_operand.hbm [shape: f32[32,32], index: 13, kind: output, shape index: {}]
  %s14 = sld [smem:[#allocation0]]
  $region89: #{tpu_custom_call.1} parent=0
    _
  %s16 = ssub.s32 1, %s14
  %s17 = scalar_select 0, %s16, %s14
  $region1: #{tpu_custom_call.1} parent=0
    #allocation3 [shape = 'u8[73728]{0}', space=vmem, size = 0x12000, scoped, tag = 'input window, operand 9, single buffered']
    #allocation4 [shape = 's32[2]{0}', space=sflag, size = 0x8, scoped, tag = 'scoped memory for tpu_custom_call.1']
    #allocation5 [shape = 's32[2]{0}', space=sflag, size = 0x8, scoped, tag = 'scoped memory for tpu_custom_call.1']
    #allocation6 [shape = 'u8[16384]{0}', space=vmem, size = 0x4000, scoped, tag = 'output window, operand 0']
    %18 = vsyncpa [#allocation4], 0
    %19 = vsyncpa [#allocation5], 0
    %s20 = scalar_lea.sflag [#allocation5], 1
    %21 = vsyncpa %s20, 0
    loop: start=0, step=1, limit=4
    $region2: #{tpu_custom_call.1} parent=1 // loop_pre_header
      _
    $region3: #{tpu_custom_call.1} parent=1 // loop_header
      %s23 = sphi 0, %s27
      %p24 = scmp.ge.s32.totalorder %s23, 4
      %s33 = sphi 0, %s35
      %s36 = sphi 0, %s33
      %s37 = sphi 0, %s36
      %s53 = sphi 0, %s37
      %s59 = sphi 0, %s61
      %s62 = sphi 0, %s59
      %s63 = sphi 0, %s62
      %s79 = sphi 0, %s63
      %s85 = sphi 0, %s87
      %s88 = sphi 0, %s85
      %s89 = sphi 0, %s88
      %s105 = sphi 0, %s89
      %s109 = sphi 0, %s109
      %s111 = sphi 0, %s109
      %s112 = sphi 0, %s111
      %s126 = sphi 0, %s112
      %s130 = sphi 0, %s130
      %s132 = sphi 0, %s130
      %s133 = sphi 0, %s132
      %s147 = sphi 0, %s133
      %s151 = sphi 0, %s151
      %s153 = sphi 0, %s151
      %s154 = sphi 0, %s153
      %s168 = sphi 0, %s154
      %s172 = sphi 0, %s172
      %s174 = sphi 0, %s172
      %s175 = sphi 0, %s174
      %s189 = sphi 0, %s175
      %s193 = sphi 0, %s193
      %s195 = sphi 0, %s193
      %s196 = sphi 0, %s195
      %s210 = sphi 0, %s196
      %s214 = sphi 0, %s214
      %s216 = sphi 0, %s214
      %s217 = sphi 0, %s216
      %s231 = sphi 0, %s217
      %s235 = sphi 0, %s235
      %s237 = sphi 0, %s235
      %s238 = sphi 0, %s237
      %s252 = sphi 0, %s238
      %s256 = sphi 0, %s256
      %s258 = sphi 0, %s256
      %s259 = sphi 0, %s258
      %s273 = sphi 0, %s259
      %s277 = sphi 0, %s277
      %s279 = sphi 0, %s277
      %s280 = sphi 0, %s279
      %s294 = sphi 0, %s280
      %s298 = sphi 0, %s298
      %s300 = sphi 0, %s298
      %s301 = sphi 0, %s300
      %s315 = sphi 0, %s301
      %s321 = sphi 0, %s323
      %s324 = sphi 0, %s321
      %s325 = sphi 0, %s324
      %s341 = sphi 0, %s325
    $region4: #{tpu_custom_call.1} parent=1 // loop_header_branch
      %26 = sbr.rel (%p24) target = $region8
    $region5: #{tpu_custom_call.1} parent=1 // loop_body
      %s28 = ssub.s32 %s23, 1
      %s29 = ssub.s32 %s23, 2
      %s30 = sadd.s32 %s23, 1
      %s31 = ssub.s32 %s23, %s30
      %p32 = scmp.eq.s32.totalorder %s31, 0
      %s34 = sadd.s32 %s33, 1
      %s35 = scalar_select %p32, %s33, %s34
      %p38 = pneg %p32
      %p39 = scmp.eq.s32.totalorder %s23, 1
      %p40 = por %p38, %p39
      %p41 = scmp.ne.s32.totalorder %s33, %s36
      %p42 = scmp.eq.s32.totalorder %s23, 0
      %p43 = por %p41, %p42
      %p44 = scmp.ne.s32.totalorder %s33, %s36
      %p45 = scmp.eq.s32.totalorder %s28, 1
      %p46 = por %p44, %p45
      %p47 = scmp.ne.s32.totalorder %s36, %s37
      %p48 = scmp.eq.s32.totalorder %s28, 0
      %p49 = por %p47, %p48
      %p50 = scmp.ne.s32.totalorder %s36, %s37
      %p51 = scmp.eq.s32.totalorder %s29, 1
      %p52 = por %p50, %p51
      %p54 = scmp.ne.s32.totalorder %s37, %s53
      %p55 = scmp.eq.s32.totalorder %s29, 0
      %p56 = por %p54, %p55
      %s57 = ssub.s32 %s23, %s30
      %p58 = scmp.eq.s32.totalorder %s57, 0
      %s60 = sadd.s32 %s59, 1
      %s61 = scalar_select %p58, %s59, %s60
      %p64 = pneg %p58
      %p65 = scmp.eq.s32.totalorder %s23, 1
      %p66 = por %p64, %p65
      %p67 = scmp.ne.s32.totalorder %s59, %s62
      %p68 = scmp.eq.s32.totalorder %s23, 0
      %p69 = por %p67, %p68
      %p70 = scmp.ne.s32.totalorder %s59, %s62
      %p71 = scmp.eq.s32.totalorder %s28, 1
      %p72 = por %p70, %p71
      %p73 = scmp.ne.s32.totalorder %s62, %s63
      %p74 = scmp.eq.s32.totalorder %s28, 0
      %p75 = por %p73, %p74
      %p76 = scmp.ne.s32.totalorder %s62, %s63
      %p77 = scmp.eq.s32.totalorder %s29, 1
      %p78 = por %p76, %p77
      %p80 = scmp.ne.s32.totalorder %s63, %s79
      %p81 = scmp.eq.s32.totalorder %s29, 0
      %p82 = por %p80, %p81
      %s83 = ssub.s32 %s23, %s30
      %p84 = scmp.eq.s32.totalorder %s83, 0
      %s86 = sadd.s32 %s85, 1
      %s87 = scalar_select %p84, %s85, %s86
      %p90 = pneg %p84
      %p91 = scmp.eq.s32.totalorder %s23, 1
      %p92 = por %p90, %p91
      %p93 = scmp.ne.s32.totalorder %s85, %s88
      %p94 = scmp.eq.s32.totalorder %s23, 0
      %p95 = por %p93, %p94
      %p96 = scmp.ne.s32.totalorder %s85, %s88
      %p97 = scmp.eq.s32.totalorder %s28, 1
      %p98 = por %p96, %p97
      %p99 = scmp.ne.s32.totalorder %s88, %s89
      %p100 = scmp.eq.s32.totalorder %s28, 0
      %p101 = por %p99, %p100
      %p102 = scmp.ne.s32.totalorder %s88, %s89
      %p103 = scmp.eq.s32.totalorder %s29, 1
      %p104 = por %p102, %p103
      %p106 = scmp.ne.s32.totalorder %s89, %s105
      %p107 = scmp.eq.s32.totalorder %s29, 0
      %p108 = por %p106, %p107
      %s110 = sadd.s32 %s109, 1
      %p113 = scmp.eq.s32.totalorder %s23, 1
      %p114 = scmp.ne.s32.totalorder %s109, %s111
      %p115 = scmp.eq.s32.totalorder %s23, 0
      %p116 = por %p114, %p115
      %p117 = scmp.ne.s32.totalorder %s109, %s111
      %p118 = scmp.eq.s32.totalorder %s28, 1
      %p119 = por %p117, %p118
      %p120 = scmp.ne.s32.totalorder %s111, %s112
      %p121 = scmp.eq.s32.totalorder %s28, 0
      %p122 = por %p120, %p121
      %p123 = scmp.ne.s32.totalorder %s111, %s112
      %p124 = scmp.eq.s32.totalorder %s29, 1
      %p125 = por %p123, %p124
      %p127 = scmp.ne.s32.totalorder %s112, %s126
      %p128 = scmp.eq.s32.totalorder %s29, 0
      %p129 = por %p127, %p128
      %s131 = sadd.s32 %s130, 1
      %p134 = scmp.eq.s32.totalorder %s23, 1
      %p135 = scmp.ne.s32.totalorder %s130, %s132
      %p136 = scmp.eq.s32.totalorder %s23, 0
      %p137 = por %p135, %p136
      %p138 = scmp.ne.s32.totalorder %s130, %s132
      %p139 = scmp.eq.s32.totalorder %s28, 1
      %p140 = por %p138, %p139
      %p141 = scmp.ne.s32.totalorder %s132, %s133
      %p142 = scmp.eq.s32.totalorder %s28, 0
      %p143 = por %p141, %p142
      %p144 = scmp.ne.s32.totalorder %s132, %s133
      %p145 = scmp.eq.s32.totalorder %s29, 1
      %p146 = por %p144, %p145
      %p148 = scmp.ne.s32.totalorder %s133, %s147
      %p149 = scmp.eq.s32.totalorder %s29, 0
      %p150 = por %p148, %p149
      %s152 = sadd.s32 %s151, 1
      %p155 = scmp.eq.s32.totalorder %s23, 1
      %p156 = scmp.ne.s32.totalorder %s151, %s153
      %p157 = scmp.eq.s32.totalorder %s23, 0
      %p158 = por %p156, %p157
      %p159 = scmp.ne.s32.totalorder %s151, %s153
      %p160 = scmp.eq.s32.totalorder %s28, 1
      %p161 = por %p159, %p160
      %p162 = scmp.ne.s32.totalorder %s153, %s154
      %p163 = scmp.eq.s32.totalorder %s28, 0
      %p164 = por %p162, %p163
      %p165 = scmp.ne.s32.totalorder %s153, %s154
      %p166 = scmp.eq.s32.totalorder %s29, 1
      %p167 = por %p165, %p166
      %p169 = scmp.ne.s32.totalorder %s154, %s168
      %p170 = scmp.eq.s32.totalorder %s29, 0
      %p171 = por %p169, %p170
      %s173 = sadd.s32 %s172, 1
      %p176 = scmp.eq.s32.totalorder %s23, 1
      %p177 = scmp.ne.s32.totalorder %s172, %s174
      %p178 = scmp.eq.s32.totalorder %s23, 0
      %p179 = por %p177, %p178
      %p180 = scmp.ne.s32.totalorder %s172, %s174
      %p181 = scmp.eq.s32.totalorder %s28, 1
      %p182 = por %p180, %p181
      %p183 = scmp.ne.s32.totalorder %s174, %s175
      %p184 = scmp.eq.s32.totalorder %s28, 0
      %p185 = por %p183, %p184
      %p186 = scmp.ne.s32.totalorder %s174, %s175
      %p187 = scmp.eq.s32.totalorder %s29, 1
      %p188 = por %p186, %p187
      %p190 = scmp.ne.s32.totalorder %s175, %s189
      %p191 = scmp.eq.s32.totalorder %s29, 0
      %p192 = por %p190, %p191
      %s194 = sadd.s32 %s193, 1
      %p197 = scmp.eq.s32.totalorder %s23, 1
      %p198 = scmp.ne.s32.totalorder %s193, %s195
      %p199 = scmp.eq.s32.totalorder %s23, 0
      %p200 = por %p198, %p199
      %p201 = scmp.ne.s32.totalorder %s193, %s195
      %p202 = scmp.eq.s32.totalorder %s28, 1
      %p203 = por %p201, %p202
      %p204 = scmp.ne.s32.totalorder %s195, %s196
      %p205 = scmp.eq.s32.totalorder %s28, 0
      %p206 = por %p204, %p205
      %p207 = scmp.ne.s32.totalorder %s195, %s196
      %p208 = scmp.eq.s32.totalorder %s29, 1
      %p209 = por %p207, %p208
      %p211 = scmp.ne.s32.totalorder %s196, %s210
      %p212 = scmp.eq.s32.totalorder %s29, 0
      %p213 = por %p211, %p212
      %s215 = sadd.s32 %s214, 1
      %p218 = scmp.eq.s32.totalorder %s23, 1
      %p219 = scmp.ne.s32.totalorder %s214, %s216
      %p220 = scmp.eq.s32.totalorder %s23, 0
      %p221 = por %p219, %p220
      %p222 = scmp.ne.s32.totalorder %s214, %s216
      %p223 = scmp.eq.s32.totalorder %s28, 1
      %p224 = por %p222, %p223
      %p225 = scmp.ne.s32.totalorder %s216, %s217
      %p226 = scmp.eq.s32.totalorder %s28, 0
      %p227 = por %p225, %p226
      %p228 = scmp.ne.s32.totalorder %s216, %s217
      %p229 = scmp.eq.s32.totalorder %s29, 1
      %p230 = por %p228, %p229
      %p232 = scmp.ne.s32.totalorder %s217, %s231
      %p233 = scmp.eq.s32.totalorder %s29, 0
      %p234 = por %p232, %p233
      %s236 = sadd.s32 %s235, 1
      %p239 = scmp.eq.s32.totalorder %s23, 1
      %p240 = scmp.ne.s32.totalorder %s235, %s237
      %p241 = scmp.eq.s32.totalorder %s23, 0
      %p242 = por %p240, %p241
      %p243 = scmp.ne.s32.totalorder %s235, %s237
      %p244 = scmp.eq.s32.totalorder %s28, 1
      %p245 = por %p243, %p244
      %p246 = scmp.ne.s32.totalorder %s237, %s238
      %p247 = scmp.eq.s32.totalorder %s28, 0
      %p248 = por %p246, %p247
      %p249 = scmp.ne.s32.totalorder %s237, %s238
      %p250 = scmp.eq.s32.totalorder %s29, 1
      %p251 = por %p249, %p250
      %p253 = scmp.ne.s32.totalorder %s238, %s252
      %p254 = scmp.eq.s32.totalorder %s29, 0
      %p255 = por %p253, %p254
      %s257 = sadd.s32 %s256, 1
      %p260 = scmp.eq.s32.totalorder %s23, 1
      %p261 = scmp.ne.s32.totalorder %s256, %s258
      %p262 = scmp.eq.s32.totalorder %s23, 0
      %p263 = por %p261, %p262
      %p264 = scmp.ne.s32.totalorder %s256, %s258
      %p265 = scmp.eq.s32.totalorder %s28, 1
      %p266 = por %p264, %p265
      %p267 = scmp.ne.s32.totalorder %s258, %s259
      %p268 = scmp.eq.s32.totalorder %s28, 0
      %p269 = por %p267, %p268
      %p270 = scmp.ne.s32.totalorder %s258, %s259
      %p271 = scmp.eq.s32.totalorder %s29, 1
      %p272 = por %p270, %p271
      %p274 = scmp.ne.s32.totalorder %s259, %s273
      %p275 = scmp.eq.s32.totalorder %s29, 0
      %p276 = por %p274, %p275
      %s278 = sadd.s32 %s277, 1
      %p281 = scmp.eq.s32.totalorder %s23, 1
      %p282 = scmp.ne.s32.totalorder %s277, %s279
      %p283 = scmp.eq.s32.totalorder %s23, 0
      %p284 = por %p282, %p283
      %p285 = scmp.ne.s32.totalorder %s277, %s279
      %p286 = scmp.eq.s32.totalorder %s28, 1
      %p287 = por %p285, %p286
      %p288 = scmp.ne.s32.totalorder %s279, %s280
      %p289 = scmp.eq.s32.totalorder %s28, 0
      %p290 = por %p288, %p289
      %p291 = scmp.ne.s32.totalorder %s279, %s280
      %p292 = scmp.eq.s32.totalorder %s29, 1
      %p293 = por %p291, %p292
      %p295 = scmp.ne.s32.totalorder %s280, %s294
      %p296 = scmp.eq.s32.totalorder %s29, 0
      %p297 = por %p295, %p296
      %s299 = sadd.s32 %s298, 1
      %p302 = scmp.eq.s32.totalorder %s23, 1
      %p303 = scmp.ne.s32.totalorder %s298, %s300
      %p304 = scmp.eq.s32.totalorder %s23, 0
      %p305 = por %p303, %p304
      %p306 = scmp.ne.s32.totalorder %s298, %s300
      %p307 = scmp.eq.s32.totalorder %s28, 1
      %p308 = por %p306, %p307
      %p309 = scmp.ne.s32.totalorder %s300, %s301
      %p310 = scmp.eq.s32.totalorder %s28, 0
      %p311 = por %p309, %p310
      %p312 = scmp.ne.s32.totalorder %s300, %s301
      %p313 = scmp.eq.s32.totalorder %s29, 1
      %p314 = por %p312, %p313
      %p316 = scmp.ne.s32.totalorder %s301, %s315
      %p317 = scmp.eq.s32.totalorder %s29, 0
      %p318 = por %p316, %p317
      %s319 = ssub.s32 %s23, %s30
      %p320 = scmp.eq.s32.totalorder %s319, 0
      %s322 = sadd.s32 %s321, 1
      %s323 = scalar_select %p320, %s321, %s322
      %p326 = pneg %p320
      %p327 = scmp.eq.s32.totalorder %s23, 1
      %p328 = por %p326, %p327
      %p329 = scmp.ne.s32.totalorder %s321, %s324
      %p330 = scmp.eq.s32.totalorder %s23, 0
      %p331 = por %p329, %p330
      %p332 = scmp.ne.s32.totalorder %s321, %s324
      %p333 = scmp.eq.s32.totalorder %s28, 1
      %p334 = por %p332, %p333
      %p335 = scmp.ne.s32.totalorder %s324, %s325
      %p336 = scmp.eq.s32.totalorder %s28, 0
      %p337 = por %p335, %p336
      %p338 = scmp.ne.s32.totalorder %s324, %s325
      %p339 = scmp.eq.s32.totalorder %s29, 1
      %p340 = por %p338, %p339
      %p342 = scmp.ne.s32.totalorder %s325, %s341
      %p343 = scmp.eq.s32.totalorder %s29, 0
      %p344 = por %p342, %p343
      %p345 = scmp.le.s32.totalorder 1, %s23
      %p346 = scmp.lt.s32.totalorder %s23, 3
      %p347 = pnand %p345, %p346
      %p348 = pneg %p347
      // Predicated region
      $region9: #{tpu_custom_call.1} parent=5 // pred_check
        _
      $region10: #{tpu_custom_call.1} parent=5 // pred_check_branch
        %350 = sbr.rel (%p347) target = $region12
      $region11: #{tpu_custom_call.1} parent=5 // pred_region
        %s351 = ssub.s32 %s23, 1
        // Predicated region
        $region13: #{tpu_custom_call.1} parent=11 // pred_check
          %p352 = pneg %p122
        $region14: #{tpu_custom_call.1} parent=11 // pred_check_branch
          %354 = sbr.rel (%p352) target = $region16
        $region15: #{tpu_custom_call.1} parent=11 // pred_region
          _
        $region16: #{tpu_custom_call.1} parent=11 // pred_fallthru
          _
        // Predicated region
        $region17: #{tpu_custom_call.1} parent=11 // pred_check
          %p355 = pneg %p143
        $region18: #{tpu_custom_call.1} parent=11 // pred_check_branch
          %357 = sbr.rel (%p355) target = $region20
        $region19: #{tpu_custom_call.1} parent=11 // pred_region
          _
        $region20: #{tpu_custom_call.1} parent=11 // pred_fallthru
          _
        // Predicated region
        $region21: #{tpu_custom_call.1} parent=11 // pred_check
          %p358 = pneg %p164
        $region22: #{tpu_custom_call.1} parent=11 // pred_check_branch
          %360 = sbr.rel (%p358) target = $region24
        $region23: #{tpu_custom_call.1} parent=11 // pred_region
          _
        $region24: #{tpu_custom_call.1} parent=11 // pred_fallthru
          _
        // Predicated region
        $region25: #{tpu_custom_call.1} parent=11 // pred_check
          %p361 = pneg %p185
        $region26: #{tpu_custom_call.1} parent=11 // pred_check_branch
          %363 = sbr.rel (%p361) target = $region28
        $region27: #{tpu_custom_call.1} parent=11 // pred_region
          _
        $region28: #{tpu_custom_call.1} parent=11 // pred_fallthru
          _
        // Predicated region
        $region29: #{tpu_custom_call.1} parent=11 // pred_check
          %p364 = pneg %p206
        $region30: #{tpu_custom_call.1} parent=11 // pred_check_branch
          %366 = sbr.rel (%p364) target = $region32
        $region31: #{tpu_custom_call.1} parent=11 // pred_region
          _
        $region32: #{tpu_custom_call.1} parent=11 // pred_fallthru
          _
        // Predicated region
        $region33: #{tpu_custom_call.1} parent=11 // pred_check
          %p367 = pneg %p227
        $region34: #{tpu_custom_call.1} parent=11 // pred_check_branch
          %369 = sbr.rel (%p367) target = $region36
        $region35: #{tpu_custom_call.1} parent=11 // pred_region
          _
        $region36: #{tpu_custom_call.1} parent=11 // pred_fallthru
          _
        // Predicated region
        $region37: #{tpu_custom_call.1} parent=11 // pred_check
          %p370 = pneg %p248
        $region38: #{tpu_custom_call.1} parent=11 // pred_check_branch
          %372 = sbr.rel (%p370) target = $region40
        $region39: #{tpu_custom_call.1} parent=11 // pred_region
          %s374 = ssub.s32 2304, 2304
          %375 = vsyncadd [#allocation4], %s374
          %s376 = sshll.u32 [#allocation3], 4
          %s377 = int_to_ptr.vmem [resolvable:$true] %s376
          %382 = dma.hbm_to_vmem [thread:$0]  %s9, 2304, %s377, [#allocation4], 64, 64, 4
        $region40: #{tpu_custom_call.1} parent=11 // pred_fallthru
          _
        // Predicated region
        $region41: #{tpu_custom_call.1} parent=11 // pred_check
          %p383 = pneg %p269
        $region42: #{tpu_custom_call.1} parent=11 // pred_check_branch
          %385 = sbr.rel (%p383) target = $region44
        $region43: #{tpu_custom_call.1} parent=11 // pred_region
          _
        $region44: #{tpu_custom_call.1} parent=11 // pred_fallthru
          _
        // Predicated region
        $region45: #{tpu_custom_call.1} parent=11 // pred_check
          %p386 = pneg %p290
        $region46: #{tpu_custom_call.1} parent=11 // pred_check_branch
          %388 = sbr.rel (%p386) target = $region48
        $region47: #{tpu_custom_call.1} parent=11 // pred_region
          _
        $region48: #{tpu_custom_call.1} parent=11 // pred_fallthru
          _
        // Predicated region
        $region49: #{tpu_custom_call.1} parent=11 // pred_check
          %p389 = pneg %p311
        $region50: #{tpu_custom_call.1} parent=11 // pred_check_branch
          %391 = sbr.rel (%p389) target = $region52
        $region51: #{tpu_custom_call.1} parent=11 // pred_region
          _
        $region52: #{tpu_custom_call.1} parent=11 // pred_fallthru
          _
      $region12: #{tpu_custom_call.1} parent=5 // pred_fallthru
        _
      %p392 = scmp.lt.s32.totalorder %s23, 2
      // Predicated region
      $region53: #{tpu_custom_call.1} parent=5 // pred_check
        %p393 = pneg %p392
      $region54: #{tpu_custom_call.1} parent=5 // pred_check_branch
        %395 = sbr.rel (%p393) target = $region56
      $region55: #{tpu_custom_call.1} parent=5 // pred_region
        // Predicated region
        $region57: #{tpu_custom_call.1} parent=55 // pred_check
          %p396 = pneg %p43
        $region58: #{tpu_custom_call.1} parent=55 // pred_check_branch
          %398 = sbr.rel (%p396) target = $region60
        $region59: #{tpu_custom_call.1} parent=55 // pred_region
          %s399 = smul.u32 2, %s23
          %p400 = scmp.lt.s32.totalorder %s399, 3
          %s401 = scalar_select %p400, %s399, 3
          %s402 = smul.addr %s401, 8
          %s403 = scalar_lea.vmem %s0, %s402
          %s404 = smul.u32 2, %s23
        $region60: #{tpu_custom_call.1} parent=55 // pred_fallthru
          _
        // Predicated region
        $region61: #{tpu_custom_call.1} parent=55 // pred_check
          %p405 = pneg %p69
        $region62: #{tpu_custom_call.1} parent=55 // pred_check_branch
          %407 = sbr.rel (%p405) target = $region64
        $region63: #{tpu_custom_call.1} parent=55 // pred_region
          %p408 = scmp.lt.s32.totalorder %s23, 1
          %s409 = scalar_select %p408, %s23, 1
          %s410 = scalar_lea.vmem %s1, %s409
        $region64: #{tpu_custom_call.1} parent=55 // pred_fallthru
          _
        // Predicated region
        $region65: #{tpu_custom_call.1} parent=55 // pred_check
          %p411 = pneg %p95
        $region66: #{tpu_custom_call.1} parent=55 // pred_check_branch
          %413 = sbr.rel (%p411) target = $region68
        $region67: #{tpu_custom_call.1} parent=55 // pred_region
          %s414 = smul.u32 2, %s23
          %p415 = scmp.lt.s32.totalorder %s414, 3
          %s416 = scalar_select %p415, %s414, 3
          %s417 = smul.addr %s416, 8
          %s418 = scalar_lea.vmem %s2, %s417
          %s419 = smul.u32 2, %s23
        $region68: #{tpu_custom_call.1} parent=55 // pred_fallthru
          _
      $region56: #{tpu_custom_call.1} parent=5 // pred_fallthru
        _
      %p420 = scmp.le.s32.totalorder 1, %s23
      %p421 = scmp.lt.s32.totalorder %s23, 3
      %p422 = pnand %p420, %p421
      %p423 = pneg %p422
      // Predicated region
      $region69: #{tpu_custom_call.1} parent=5 // pred_check
        _
      $region70: #{tpu_custom_call.1} parent=5 // pred_check_branch
        %425 = sbr.rel (%p422) target = $region72
      $region71: #{tpu_custom_call.1} parent=5 // pred_region
        %s426 = ssub.s32 %s23, 1
        // Predicated region
        $region73: #{tpu_custom_call.1} parent=71 // pred_check
          %p427 = pneg %p248
        $region74: #{tpu_custom_call.1} parent=71 // pred_check_branch
          %429 = sbr.rel (%p427) target = $region76
        $region75: #{tpu_custom_call.1} parent=71 // pred_region
          %430 = dma.done [#allocation4], 2304
        $region76: #{tpu_custom_call.1} parent=71 // pred_fallthru
          _
        %s431 = smul.u32 2, %s28
        %p432 = scmp.lt.s32.totalorder %s431, 3
        %s433 = scalar_select %p432, %s431, 3
        %s434 = smul.addr %s433, 8
        %s435 = scalar_lea.vmem %s0, %s434
        %p436 = pneg %p49
        %p437 = pneg %p46
        %p438 = scmp.lt.s32.totalorder %s28, 1
        %s439 = scalar_select %p438, %s28, 1
        %s440 = scalar_lea.vmem %s1, %s439
        %p441 = pneg %p75
        %p442 = pneg %p72
        %s443 = smul.u32 2, %s28
        %p444 = scmp.lt.s32.totalorder %s443, 3
        %s445 = scalar_select %p444, %s443, 3
        %s446 = smul.addr %s445, 8
        %s447 = scalar_lea.vmem %s2, %s446
        %p448 = pneg %p101
        %p449 = pneg %p98
        %p450 = pneg %p122
        %p451 = pneg %p119
        %p452 = pneg %p143
        %p453 = pneg %p140
        %p454 = pneg %p164
        %p455 = pneg %p161
        %p456 = pneg %p185
        %p457 = pneg %p182
        %p458 = pneg %p206
        %p459 = pneg %p203
        %p460 = pneg %p227
        %p461 = pneg %p224
        %p462 = pneg %p248
        %p463 = pneg %p245
        %p464 = pneg %p269
        %p465 = pneg %p266
        %p466 = pneg %p290
        %p467 = pneg %p287
        %p468 = pneg %p311
        %p469 = pneg %p308
        %p470 = pneg %p337
        %p471 = pneg %p334
        %s472 = sand.u32 %s324, 1
        %s473 = scalar_lea.sflag [#allocation5], %s472
        %s474 = sand.u32 %s324, 1
        %s475 = smul.addr %s474, 16
        %s476 = scalar_lea.vmem [#allocation6], %s475
        %s477 = smul.u32 2, %s28
        %p478 = scmp.lt.s32.totalorder %s477, 3
        %s479 = scalar_select %p478, %s477, 3
        %s480 = smul.addr %s479, 8
        %s481 = scalar_lea.vmem %s0, %s480
        %s482 = smul.u32 2, %s28
        %p483 = scmp.lt.s32.totalorder %s28, 1
        %s484 = scalar_select %p483, %s28, 1
        %s485 = scalar_lea.vmem %s1, %s484
        %s486 = smul.u32 2, %s28
        %p487 = scmp.lt.s32.totalorder %s486, 3
        %s488 = scalar_select %p487, %s486, 3
        %s489 = smul.addr %s488, 8
        %s490 = scalar_lea.vmem %s2, %s489
        %s491 = smul.u32 2, %s28
        %s492 = smul.u32 2, %s28
        %v494 = vld [vmem:[%s481] sm:$0xff]
        %v495 = vld [vmem:[%s481 + $0x8] sm:$0xff]
        %v496 = vld [vmem:[%s490] sm:$0xff]
        %v497 = vld [vmem:[%s490 + $0x8] sm:$0xff]
        %vm498 = vcmask 261120
        %v499 = vsel %vm498, %v494, 0.0
        %500 = vadd.xlane.f32.xlu0 %v499
        %v501 = vpop.xlane.xlu0 %500
        %v502 = vsel %vm498, %v495, 0.0
        %503 = vadd.xlane.f32.xlu0 %v502
        %v504 = vpop.xlane.xlu0 %503
        %v505 = vrcp.pop 32.0
        %v506 = vmul.f32 %v501, %v505
        %v507 = vmul.f32 %v504, %v505
        %v508 = vsub.f32 %v494, %v506
        %v509 = vsub.f32 %v495, %v507
        %v510 = vmul.f32 %v508, %v508
        %v511 = vmul.f32 %v509, %v509
        %v512 = vsel %vm498, %v510, 0.0
        %513 = vadd.xlane.f32.xlu0 %v512
        %v514 = vpop.xlane.xlu0 %513
        %v515 = vsel %vm498, %v511, 0.0
        %516 = vadd.xlane.f32.xlu0 %v515
        %v517 = vpop.xlane.xlu0 %516
        %v518 = vmul.f32 %v514, %v505
        %v519 = vmul.f32 %v517, %v505
        %v520 = vadd.f32 %v518, 1e-05
        %v521 = vadd.f32 %v519, 1e-05
        %v522 = vrsqrt.pop %v520
        %v523 = vrsqrt.pop %v521
        %v524 = vmul.f32 %v508, %v522
        %v525 = vmul.f32 %v509, %v523
        %v526 = vld [vmem:[%s3] sm:$0x1]
        %v528 = vlaneseq
        %v529 = vshrl.u32 %v528, 7
        %v530 = vsub.s32 0, %v529
        %v531 = vrot.slane %v526, %v530
        %v533 = vmul.f32 %v524, %v531
        %v534 = vmul.f32 %v525, %v531
        %v535 = vld [vmem:[%s4] sm:$0x1]
        %v537 = vlaneseq
        %v538 = vshrl.u32 %v537, 7
        %v539 = vsub.s32 0, %v538
        %v540 = vrot.slane %v535, %v539
        %v542 = vadd.f32 %v533, %v540
        %v543 = vadd.f32 %v534, %v540
        %v544 = vpack.c.bf16 %v543, %v542
        %v545 = vld [vmem:[%s7] sm:$0xf]
        %v546 = vld [vmem:[%s7 + $0x4] sm:$0xf]
        %v547 = vld [vmem:[%s7 + $0x8] sm:$0xf]
        %v548 = vld [vmem:[%s7 + $0xc] sm:$0xf]
        %v553 = vunpack.c.l.b16 %v545
        %v554 = vunpack.c.l.b16 %v546
        %v555 = vunpack.c.l.b16 %v547
        %v556 = vunpack.c.l.b16 %v548
        %v557 = vpack.c.b16 %v554, %v553
        %v558 = vpack.c.b16 %v556, %v555
        %v562 = vsel %vm498, %v544, 0
        %564 = vmatprep.subr.bf16.mxu0 0
        %565 = vmatpush1.bf16.msra.mxu0 0
        %566 = vmatprep.subr.bf16.mxu0 0
        %567 = vmatpush1.bf16.msra.mxu0 0
        %568 = vmatprep.subr.bf16.mxu0 0
        %569 = vmatpush1.bf16.msra.mxu0 0
        %570 = vmatprep.subr.bf16.mxu0 0
        %571 = vmatpush1.bf16.msra.mxu0 0
        %572 = vmatprep.subr.bf16.mxu0 0
        %573 = vmatpush1.bf16.msra.mxu0 0
        %574 = vmatprep.subr.bf16.mxu0 0
        %575 = vmatpush1.bf16.msra.mxu0 0
        %576 = vmatprep.subr.bf16.mxu0 0
        %577 = vmatpush1.bf16.msra.mxu0 %v558
        %578 = vmatprep.subr.bf16.mxu0 0
        %579 = vmatpush1.bf16.msra.mxu0 %v557
        %580 = vmatprep.subr.bf16.mxu0 0
        %581 = vmatpush2.bf16.msra.mxu0 0
        %582 = vmatprep.subr.bf16.mxu0 0
        %583 = vmatpush2.bf16.msra.mxu0 0
        %584 = vmatprep.subr.bf16.mxu0 0
        %585 = vmatpush2.bf16.msra.mxu0 0
        %586 = vmatprep.subr.bf16.mxu0 0
        %587 = vmatpush2.bf16.msra.mxu0 0
        %588 = vmatprep.subr.bf16.mxu0 0
        %589 = vmatpush2.bf16.msra.mxu0 0
        %590 = vmatprep.subr.bf16.mxu0 0
        %591 = vmatpush2.bf16.msra.mxu0 0
        %592 = vmatprep.subr.bf16.mxu0 0
        %593 = vmatpush2.bf16.msra.mxu0 0
        %594 = vmatprep.subr.bf16.mxu0 0
        %595 = vmatpush2.bf16.msra.mxu0 0
        %596 = vmatprep.mubr.bf16.mxu0 0
        %597 = vmatmul.mubr.bf16.gmra.mxu0 %v562
        %v598 = vpop.f32.mrf.mxu0
        %v599 = vadd.f32 0.0, %v598
        %v600 = vpop.f32.mrf.mxu0
        %v601 = vpop.f32.mrf.mxu0
        %v602 = vadd.f32 0.0, %v601
        %v603 = vpop.f32.mrf.mxu0
        %604 = vdwg.mxu0
        %v605 = vpack.c.bf16 %v602, %v599
        %v606 = vld [vmem:[%s485] sm:$0x1]
        %v608 = vlaneseq
        %v609 = vshrl.u32 %v608, 7
        %v610 = vsub.s32 0, %v609
        %v611 = vrot.slane %v606, %v610
        %614 = vrot.lane.b32.xlu0 %v605, 96
        %v615 = vpop.permute.xlu0 %614
        %vm616 = vcmask 130048
        %v618 = vsel %vm616, %v605, 0
        %v621 = vsel %vm616, %v615, 0
        %623 = vmatprep.subr.bf16.mxu0 0
        %624 = vmatpush1.bf16.xpose.msra.mxu0 0
        %625 = vmatprep.subr.bf16.mxu0 0
        %626 = vmatpush1.bf16.xpose.msra.mxu0 0
        %627 = vmatprep.subr.bf16.mxu0 0
        %628 = vmatpush1.bf16.xpose.msra.mxu0 0
        %629 = vmatprep.subr.bf16.mxu0 0
        %630 = vmatpush1.bf16.xpose.msra.mxu0 0
        %631 = vmatprep.subr.bf16.mxu0 0
        %632 = vmatpush1.bf16.xpose.msra.mxu0 0
        %633 = vmatprep.subr.bf16.mxu0 0
        %634 = vmatpush1.bf16.xpose.msra.mxu0 0
        %635 = vmatprep.subr.bf16.mxu0 0
        %636 = vmatpush1.bf16.xpose.msra.mxu0 0
        %637 = vmatprep.subr.bf16.mxu0 0
        %638 = vmatpush1.bf16.xpose.msra.mxu0 %v621
        %639 = vmatprep.subr.bf16.mxu0 0
        %640 = vmatpush2.bf16.xpose.msra.mxu0 0
        %641 = vmatprep.subr.bf16.mxu0 0
        %642 = vmatpush2.bf16.xpose.msra.mxu0 0
        %643 = vmatprep.subr.bf16.mxu0 0
        %644 = vmatpush2.bf16.xpose.msra.mxu0 0
        %645 = vmatprep.subr.bf16.mxu0 0
        %646 = vmatpush2.bf16.xpose.msra.mxu0 0
        %647 = vmatprep.subr.bf16.mxu0 0
        %648 = vmatpush2.bf16.xpose.msra.mxu0 0
        %649 = vmatprep.subr.bf16.mxu0 0
        %650 = vmatpush2.bf16.xpose.msra.mxu0 0
        %651 = vmatprep.subr.bf16.mxu0 0
        %652 = vmatpush2.bf16.xpose.msra.mxu0 0
        %653 = vmatprep.subr.bf16.mxu0 0
        %654 = vmatpush2.bf16.xpose.msra.mxu0 0
        %655 = vmatprep.mubr.bf16.mxu0 0
        %656 = vmatmul.mubr.bf16.gmra.mxu0 %v618
        %v657 = vpop.f32.mrf.mxu0
        %v658 = vadd.f32 %v611, %v657
        %v659 = vpop.f32.mrf.mxu0
        %v660 = vpop.f32.mrf.mxu0
        %v661 = vadd.f32 %v611, %v660
        %v662 = vpop.f32.mrf.mxu0
        %663 = vdwg.mxu0
        %v664 = vsel %vm616, %v658, -inf
        %665 = vmax.xlane.f32.xlu0 %v664
        %v666 = vpop.xlane.xlu0 %665
        %v667 = vsel %vm616, %v661, -inf
        %668 = vmax.xlane.f32.xlu0 %v667
        %v669 = vpop.xlane.xlu0 %668
        %v670 = vsub.f32 %v658, %v666
        %v671 = vsub.f32 %v661, %v669
        %v672 = vmul.f32 %v670, 1.442695
        %v673 = vpow.pop %v672
        %v674 = vmul.f32 %v671, 1.442695
        %v675 = vpow.pop %v674
        %v676 = vsel %vm616, %v673, 0.0
        %677 = vadd.xlane.f32.xlu0 %v676
        %v678 = vpop.xlane.xlu0 %677
        %v679 = vsel %vm616, %v675, 0.0
        %680 = vadd.xlane.f32.xlu0 %v679
        %v681 = vpop.xlane.xlu0 %680
        %v682 = vrcp.pop %v678
        %v683 = vrcp.pop %v681
        %v684 = vmul.f32 %v673, %v682
        %v685 = vmul.f32 %v675, %v683
        %v686 = vpack.c.bf16 %v685, %v684
        %687 = vrot.lane.b32.xlu0 %v605, 64
        %v688 = vpop.permute.xlu0 %687
        %v691 = vsel %vm616, %v686, 0
        %693 = vmatprep.subr.bf16.mxu0 0
        %694 = vmatpush1.bf16.msra.mxu0 0
        %695 = vmatprep.subr.bf16.mxu0 0
        %696 = vmatpush1.bf16.msra.mxu0 0
        %697 = vmatprep.subr.bf16.mxu0 0
        %698 = vmatpush1.bf16.msra.mxu0 0
        %699 = vmatprep.subr.bf16.mxu0 0
        %700 = vmatpush1.bf16.msra.mxu0 0
        %701 = vmatprep.subr.bf16.mxu0 0
        %702 = vmatpush1.bf16.msra.mxu0 0
        %703 = vmatprep.subr.bf16.mxu0 0
        %704 = vmatpush1.bf16.msra.mxu0 0
        %705 = vmatprep.subr.bf16.mxu0 0
        %706 = vmatpush1.bf16.msra.mxu0 0
        %707 = vmatprep.subr.bf16.mxu0 0
        %708 = vmatpush1.bf16.msra.mxu0 %v688
        %709 = vmatprep.subr.bf16.mxu0 0
        %710 = vmatpush2.bf16.msra.mxu0 0
        %711 = vmatprep.subr.bf16.mxu0 0
        %712 = vmatpush2.bf16.msra.mxu0 0
        %713 = vmatprep.subr.bf16.mxu0 0
        %714 = vmatpush2.bf16.msra.mxu0 0
        %715 = vmatprep.subr.bf16.mxu0 0
        %716 = vmatpush2.bf16.msra.mxu0 0
        %717 = vmatprep.subr.bf16.mxu0 0
        %718 = vmatpush2.bf16.msra.mxu0 0
        %719 = vmatprep.subr.bf16.mxu0 0
        %720 = vmatpush2.bf16.msra.mxu0 0
        %721 = vmatprep.subr.bf16.mxu0 0
        %722 = vmatpush2.bf16.msra.mxu0 0
        %723 = vmatprep.subr.bf16.mxu0 0
        %724 = vmatpush2.bf16.msra.mxu0 0
        %725 = vmatprep.mubr.bf16.mxu0 0
        %726 = vmatmul.mubr.bf16.gmra.mxu0 %v691
        %v727 = vpop.f32.mrf.mxu0
        %v728 = vadd.f32 0.0, %v727
        %v729 = vpop.f32.mrf.mxu0
        %v730 = vpop.f32.mrf.mxu0
        %v731 = vadd.f32 0.0, %v730
        %v732 = vpop.f32.mrf.mxu0
        %733 = vdwg.mxu0
        %v734 = vpack.c.bf16 %v731, %v728
        %735 = vrot.lane.b32.xlu0 %v605, 112
        %v736 = vpop.permute.xlu0 %735
        %737 = vrot.lane.b32.xlu0 %v605, 80
        %v738 = vpop.permute.xlu0 %737
        %v740 = vsel %vm616, %v736, 0
        %v743 = vsel %vm616, %v738, 0
        %745 = vmatprep.subr.bf16.mxu0 0
        %746 = vmatpush1.bf16.xpose.msra.mxu0 0
        %747 = vmatprep.subr.bf16.mxu0 0
        %748 = vmatpush1.bf16.xpose.msra.mxu0 0
        %749 = vmatprep.subr.bf16.mxu0 0
        %750 = vmatpush1.bf16.xpose.msra.mxu0 0
        %751 = vmatprep.subr.bf16.mxu0 0
        %752 = vmatpush1.bf16.xpose.msra.mxu0 0
        %753 = vmatprep.subr.bf16.mxu0 0
        %754 = vmatpush1.bf16.xpose.msra.mxu0 0
        %755 = vmatprep.subr.bf16.mxu0 0
        %756 = vmatpush1.bf16.xpose.msra.mxu0 0
        %757 = vmatprep.subr.bf16.mxu0 0
        %758 = vmatpush1.bf16.xpose.msra.mxu0 0
        %759 = vmatprep.subr.bf16.mxu0 0
        %760 = vmatpush1.bf16.xpose.msra.mxu0 %v743
        %761 = vmatprep.subr.bf16.mxu0 0
        %762 = vmatpush2.bf16.xpose.msra.mxu0 0
        %763 = vmatprep.subr.bf16.mxu0 0
        %764 = vmatpush2.bf16.xpose.msra.mxu0 0
        %765 = vmatprep.subr.bf16.mxu0 0
        %766 = vmatpush2.bf16.xpose.msra.mxu0 0
        %767 = vmatprep.subr.bf16.mxu0 0
        %768 = vmatpush2.bf16.xpose.msra.mxu0 0
        %769 = vmatprep.subr.bf16.mxu0 0
        %770 = vmatpush2.bf16.xpose.msra.mxu0 0
        %771 = vmatprep.subr.bf16.mxu0 0
        %772 = vmatpush2.bf16.xpose.msra.mxu0 0
        %773 = vmatprep.subr.bf16.mxu0 0
        %774 = vmatpush2.bf16.xpose.msra.mxu0 0
        %775 = vmatprep.subr.bf16.mxu0 0
        %776 = vmatpush2.bf16.xpose.msra.mxu0 0
        %777 = vmatprep.mubr.bf16.mxu0 0
        %778 = vmatmul.mubr.bf16.gmra.mxu0 %v740
        %v779 = vpop.f32.mrf.mxu0
        %v780 = vadd.f32 %v611, %v779
        %v781 = vpop.f32.mrf.mxu0
        %v782 = vpop.f32.mrf.mxu0
        %v783 = vadd.f32 %v611, %v782
        %v784 = vpop.f32.mrf.mxu0
        %785 = vdwg.mxu0
        %v786 = vsel %vm616, %v780, -inf
        %787 = vmax.xlane.f32.xlu0 %v786
        %v788 = vpop.xlane.xlu0 %787
        %v789 = vsel %vm616, %v783, -inf
        %790 = vmax.xlane.f32.xlu0 %v789
        %v791 = vpop.xlane.xlu0 %790
        %v792 = vsub.f32 %v780, %v788
        %v793 = vsub.f32 %v783, %v791
        %v794 = vmul.f32 %v792, 1.442695
        %v795 = vpow.pop %v794
        %v796 = vmul.f32 %v793, 1.442695
        %v797 = vpow.pop %v796
        %v798 = vsel %vm616, %v795, 0.0
        %799 = vadd.xlane.f32.xlu0 %v798
        %v800 = vpop.xlane.xlu0 %799
        %v801 = vsel %vm616, %v797, 0.0
        %802 = vadd.xlane.f32.xlu0 %v801
        %v803 = vpop.xlane.xlu0 %802
        %v804 = vrcp.pop %v800
        %v805 = vrcp.pop %v803
        %v806 = vmul.f32 %v795, %v804
        %v807 = vmul.f32 %v797, %v805
        %v808 = vpack.c.bf16 %v807, %v806
        %809 = vrot.lane.b32.xlu0 %v605, 48
        %v810 = vpop.permute.xlu0 %809
        %v813 = vsel %vm616, %v808, 0
        %815 = vmatprep.subr.bf16.mxu0 0
        %816 = vmatpush1.bf16.msra.mxu0 0
        %817 = vmatprep.subr.bf16.mxu0 0
        %818 = vmatpush1.bf16.msra.mxu0 0
        %819 = vmatprep.subr.bf16.mxu0 0
        %820 = vmatpush1.bf16.msra.mxu0 0
        %821 = vmatprep.subr.bf16.mxu0 0
        %822 = vmatpush1.bf16.msra.mxu0 0
        %823 = vmatprep.subr.bf16.mxu0 0
        %824 = vmatpush1.bf16.msra.mxu0 0
        %825 = vmatprep.subr.bf16.mxu0 0
        %826 = vmatpush1.bf16.msra.mxu0 0
        %827 = vmatprep.subr.bf16.mxu0 0
        %828 = vmatpush1.bf16.msra.mxu0 0
        %829 = vmatprep.subr.bf16.mxu0 0
        %830 = vmatpush1.bf16.msra.mxu0 %v810
        %831 = vmatprep.subr.bf16.mxu0 0
        %832 = vmatpush2.bf16.msra.mxu0 0
        %833 = vmatprep.subr.bf16.mxu0 0
        %834 = vmatpush2.bf16.msra.mxu0 0
        %835 = vmatprep.subr.bf16.mxu0 0
        %836 = vmatpush2.bf16.msra.mxu0 0
        %837 = vmatprep.subr.bf16.mxu0 0
        %838 = vmatpush2.bf16.msra.mxu0 0
        %839 = vmatprep.subr.bf16.mxu0 0
        %840 = vmatpush2.bf16.msra.mxu0 0
        %841 = vmatprep.subr.bf16.mxu0 0
        %842 = vmatpush2.bf16.msra.mxu0 0
        %843 = vmatprep.subr.bf16.mxu0 0
        %844 = vmatpush2.bf16.msra.mxu0 0
        %845 = vmatprep.subr.bf16.mxu0 0
        %846 = vmatpush2.bf16.msra.mxu0 0
        %847 = vmatprep.mubr.bf16.mxu0 0
        %848 = vmatmul.mubr.bf16.gmra.mxu0 %v813
        %v849 = vpop.f32.mrf.mxu0
        %v850 = vadd.f32 0.0, %v849
        %v851 = vpop.f32.mrf.mxu0
        %v852 = vpop.f32.mrf.mxu0
        %v853 = vadd.f32 0.0, %v852
        %v854 = vpop.f32.mrf.mxu0
        %855 = vdwg.mxu0
        %v856 = vpack.c.bf16 %v853, %v850
        %858 = vrot.lane.b32.xlu0 %v856, 16
        %v859 = vpop.permute.xlu0 %858
        %v862 = vsel %vm616, %v734, %v859
        %v863 = vld [vmem:[%s8] sm:$0xf]
        %v864 = vld [vmem:[%s8 + $0x4] sm:$0xf]
        %v865 = vld [vmem:[%s8 + $0x8] sm:$0xf]
        %v866 = vld [vmem:[%s8 + $0xc] sm:$0xf]
        %v871 = vunpack.c.l.b16 %v863
        %v872 = vunpack.c.l.b16 %v864
        %v873 = vunpack.c.l.b16 %v865
        %v874 = vunpack.c.l.b16 %v866
        %v875 = vpack.c.b16 %v872, %v871
        %v876 = vpack.c.b16 %v874, %v873
        %v879 = vsel %vm498, %v862, 0
        %881 = vmatprep.subr.bf16.mxu0 0
        %882 = vmatpush1.bf16.msra.mxu0 0
        %883 = vmatprep.subr.bf16.mxu0 0
        %884 = vmatpush1.bf16.msra.mxu0 0
        %885 = vmatprep.subr.bf16.mxu0 0
        %886 = vmatpush1.bf16.msra.mxu0 0
        %887 = vmatprep.subr.bf16.mxu0 0
        %888 = vmatpush1.bf16.msra.mxu0 0
        %889 = vmatprep.subr.bf16.mxu0 0
        %890 = vmatpush1.bf16.msra.mxu0 0
        %891 = vmatprep.subr.bf16.mxu0 0
        %892 = vmatpush1.bf16.msra.mxu0 0
        %893 = vmatprep.subr.bf16.mxu0 0
        %894 = vmatpush1.bf16.msra.mxu0 %v876
        %895 = vmatprep.subr.bf16.mxu0 0
        %896 = vmatpush1.bf16.msra.mxu0 %v875
        %897 = vmatprep.subr.bf16.mxu0 0
        %898 = vmatpush2.bf16.msra.mxu0 0
        %899 = vmatprep.subr.bf16.mxu0 0
        %900 = vmatpush2.bf16.msra.mxu0 0
        %901 = vmatprep.subr.bf16.mxu0 0
        %902 = vmatpush2.bf16.msra.mxu0 0
        %903 = vmatprep.subr.bf16.mxu0 0
        %904 = vmatpush2.bf16.msra.mxu0 0
        %905 = vmatprep.subr.bf16.mxu0 0
        %906 = vmatpush2.bf16.msra.mxu0 0
        %907 = vmatprep.subr.bf16.mxu0 0
        %908 = vmatpush2.bf16.msra.mxu0 0
        %909 = vmatprep.subr.bf16.mxu0 0
        %910 = vmatpush2.bf16.msra.mxu0 0
        %911 = vmatprep.subr.bf16.mxu0 0
        %912 = vmatpush2.bf16.msra.mxu0 0
        %913 = vmatprep.mubr.bf16.mxu0 0
        %914 = vmatmul.mubr.bf16.gmra.mxu0 %v879
        %v915 = vpop.f32.mrf.mxu0
        %v916 = vadd.f32 0.0, %v915
        %v917 = vpop.f32.mrf.mxu0
        %v918 = vpop.f32.mrf.mxu0
        %v919 = vadd.f32 0.0, %v918
        %v920 = vpop.f32.mrf.mxu0
        %921 = vdwg.mxu0
        %v922 = vadd.f32 %v494, %v916
        %v923 = vadd.f32 %v495, %v919
        %925 = vset.pattern.permute.xlu0 0
        %926 = vperm.xlu0 %925, %v496
        %v927 = vpop.permute.xlu0 %926
        %930 = vset.pattern.permute.xlu0 0
        %931 = vperm.xlu0 %930, %v497
        %v932 = vpop.permute.xlu0 %931
        %v934 = vmul.f32 %v922, %v927
        %v935 = vmul.f32 %v923, %v932
        %v936 = vsel %vm498, %v934, 0.0
        %937 = vadd.xlane.f32.xlu0 %v936
        %v938 = vpop.xlane.xlu0 %937
        %v939 = vsel %vm498, %v935, 0.0
        %940 = vadd.xlane.f32.xlu0 %v939
        %v941 = vpop.xlane.xlu0 %940
        %v942 = vmul.f32 %v938, %v505
        %v943 = vmul.f32 %v941, %v505
        %v944 = vsub.f32 %v934, %v942
        %v945 = vsub.f32 %v935, %v943
        %v946 = vmul.f32 %v944, %v944
        %v947 = vmul.f32 %v945, %v945
        %v948 = vsel %vm498, %v946, 0.0
        %949 = vadd.xlane.f32.xlu0 %v948
        %v950 = vpop.xlane.xlu0 %949
        %v951 = vsel %vm498, %v947, 0.0
        %952 = vadd.xlane.f32.xlu0 %v951
        %v953 = vpop.xlane.xlu0 %952
        %v954 = vmul.f32 %v950, %v505
        %v955 = vmul.f32 %v953, %v505
        %v956 = vadd.f32 %v954, 1e-05
        %v957 = vadd.f32 %v955, 1e-05
        %v958 = vrsqrt.pop %v956
        %v959 = vrsqrt.pop %v957
        %v960 = vmul.f32 %v944, %v958
        %v961 = vmul.f32 %v945, %v959
        %v962 = vld [vmem:[%s5] sm:$0x1]
        %v964 = vlaneseq
        %v965 = vshrl.u32 %v964, 7
        %v966 = vsub.s32 0, %v965
        %v967 = vrot.slane %v962, %v966
        %v969 = vmul.f32 %v960, %v967
        %v970 = vmul.f32 %v961, %v967
        %v971 = vld [vmem:[%s6] sm:$0x1]
        %v973 = vlaneseq
        %v974 = vshrl.u32 %v973, 7
        %v975 = vsub.s32 0, %v974
        %v976 = vrot.slane %v971, %v975
        %v978 = vadd.f32 %v969, %v976
        %v979 = vadd.f32 %v970, %v976
        %v980 = vpack.c.bf16 %v979, %v978
        %vm981 = vcmask 254976
        %982 = vst.msk [vmem:[#allocation2] sm:$0x3] %vm981, 0
        %vm983 = vcmask 257026
        %984 = vst.msk [vmem:[#allocation2 + $0x8] sm:$0xc] %vm983, 0
        %v986 = vunpack.c.l.b16 %v980
        %v987 = vunpack.c.h.b16 %v980
        %v988 = vpack.c.b16 %v986, %v986
        %v989 = vpack.c.b16 %v987, %v987
        %vm990 = vcmask 1041408
        %vm991 = vcmask 1045508
        %vm992 = vmor %vm990, %vm991
        %v993 = vrot.slane %v988, 6
        %v994 = vrot.slane %v993, 4
        %v995 = vrot.slane %v989, 6
        %v996 = vsel %vm992, %v994, %v995
        %v997 = vrot.slane %v995, 4
        %1001 = vst.msk [vmem:[#allocation2] sm:$0xc] %vm983, %v993
        %vm1002 = vcmask 257024
        %1003 = vst.msk [vmem:[#allocation2 + $0x4] sm:$0xf] %vm1002, %v996
        %1004 = vst.msk [vmem:[#allocation2 + $0x8] sm:$0x3] %vm981, %v997
        %v1005 = vld [vmem:[#allocation2] sm:$0xf]
        %v1006 = vld [vmem:[#allocation2 + $0x4] sm:$0xf]
        %v1007 = vld [vmem:[#allocation2 + $0x8] sm:$0xf]
        %v1010 = vunpack.c.l.b16 %v1005
        %v1011 = vunpack.c.l.b16 %v1006
        %v1012 = vpack.c.b16 %v1011, %v1010
        %v1014 = vunpack.c.l.b16 %v1007
        %v1015 = vpack.c.b16 %v1014, %v1014
        %vm1016 = vsmask.f32 7424
        %v1018 = vshrl.u32 %v1012, 16
        %v1020 = vshll.u32 %v1012, 16
        %v1022 = vrot.slane %v1020, 1
        %v1023 = vor.u32 %v1018, %v1022
        %v1025 = vshll.u32 %v1015, 16
        %v1027 = vrot.slane %v1025, 1
        %v1028 = vsel %vm1016, %v1023, %v1027
        %1029 = vrot.lane.b32.xlu0 %v1028, 32
        %v1030 = vpop.permute.xlu0 %1029
        %vm1031 = vcmask 1046528
        %v1032 = vrot.slane %v1012, 1
        %v1033 = vrot.slane %v1015, 1
        %v1034 = vsel %vm1031, %v1032, %v1033
        %1035 = vrot.lane.b32.xlu0 %v1034, 64
        %v1036 = vpop.permute.xlu0 %1035
        %vm1037 = vsmask.f32 6400
        %v1038 = vrot.slane %v1018, 1
        %v1039 = vrot.slane %v1020, 2
        %v1040 = vor.u32 %v1038, %v1039
        %v1041 = vshrl.u32 %v1015, 16
        %v1043 = vrot.slane %v1041, 1
        %v1044 = vrot.slane %v1025, 2
        %v1045 = vor.u32 %v1043, %v1044
        %v1046 = vsel %vm1037, %v1040, %v1045
        %1047 = vrot.lane.b32.xlu0 %v1046, 96
        %v1048 = vpop.permute.xlu0 %1047
        %vm1049 = vcmask 1045504
        %v1050 = vrot.slane %v1012, 2
        %v1051 = vrot.slane %v1015, 2
        %v1052 = vsel %vm1049, %v1050, %v1051
        %vm1053 = vsmask.f32 5376
        %v1054 = vrot.slane %v1018, 2
        %v1055 = vrot.slane %v1020, 3
        %v1056 = vor.u32 %v1054, %v1055
        %v1057 = vrot.slane %v1041, 2
        %v1058 = vrot.slane %v1025, 3
        %v1059 = vor.u32 %v1057, %v1058
        %v1060 = vsel %vm1053, %v1056, %v1059
        %1061 = vrot.lane.b32.xlu0 %v1060, 32
        %v1062 = vpop.permute.xlu0 %1061
        %vm1063 = vcmask 1044480
        %v1064 = vrot.slane %v1012, 3
        %v1065 = vrot.slane %v1015, 3
        %v1066 = vsel %vm1063, %v1064, %v1065
        %1067 = vrot.lane.b32.xlu0 %v1066, 64
        %v1068 = vpop.permute.xlu0 %1067
        %vm1069 = vsmask.f32 4352
        %v1070 = vrot.slane %v1018, 3
        %v1071 = vrot.slane %v1020, 4
        %v1072 = vor.u32 %v1070, %v1071
        %v1073 = vrot.slane %v1041, 3
        %v1074 = vrot.slane %v1025, 4
        %v1075 = vor.u32 %v1073, %v1074
        %v1076 = vsel %vm1069, %v1072, %v1075
        %1077 = vrot.lane.b32.xlu0 %v1076, 96
        %v1078 = vpop.permute.xlu0 %1077
        %v1079 = vpack.c.b16 %v1014, %v1011
        %v1081 = vsel %vm498, %v1012, %v1030
        %vm1082 = vcmask 523264
        %v1084 = vsel %vm1082, %v1081, %v1036
        %vm1085 = vcmask 785408
        %v1087 = vsel %vm1085, %v1084, %v1048
        %v1091 = vsel %vm498, %v1052, %v1062
        %v1093 = vsel %vm1082, %v1091, %v1068
        %v1095 = vsel %vm1085, %v1093, %v1078
        %v1097 = vld [vmem:[#allocation3] sm:$0xf]
        %v1098 = vld [vmem:[#allocation3 + $0x4] sm:$0xf]
        %v1099 = vld [vmem:[#allocation3 + $0x8] sm:$0xf]
        %v1100 = vld [vmem:[#allocation3 + $0xc] sm:$0xf]
        %v1101 = vld [vmem:[#allocation3 + $0x10] sm:$0xf]
        %v1102 = vld [vmem:[#allocation3 + $0x14] sm:$0xf]
        %v1103 = vld [vmem:[#allocation3 + $0x18] sm:$0xf]
        %v1104 = vld [vmem:[#allocation3 + $0x1c] sm:$0xf]
        %v1105 = vld [vmem:[#allocation3 + $0x20] sm:$0xf]
        %v1106 = vld [vmem:[#allocation3 + $0x24] sm:$0xf]
        %v1107 = vld [vmem:[#allocation3 + $0x28] sm:$0xf]
        %v1108 = vld [vmem:[#allocation3 + $0x2c] sm:$0xf]
        %v1109 = vld [vmem:[#allocation3 + $0x30] sm:$0xf]
        %v1110 = vld [vmem:[#allocation3 + $0x34] sm:$0xf]
        %v1111 = vld [vmem:[#allocation3 + $0x38] sm:$0xf]
        %v1112 = vld [vmem:[#allocation3 + $0x3c] sm:$0xf]
        %v1113 = vld [vmem:[#allocation3 + $0x40] sm:$0xf]
        %v1114 = vld [vmem:[#allocation3 + $0x44] sm:$0xf]
        %v1115 = vld [vmem:[#allocation3 + $0x48] sm:$0xf]
        %v1116 = vld [vmem:[#allocation3 + $0x4c] sm:$0xf]
        %v1117 = vld [vmem:[#allocation3 + $0x50] sm:$0xf]
        %v1118 = vld [vmem:[#allocation3 + $0x54] sm:$0xf]
        %v1119 = vld [vmem:[#allocation3 + $0x58] sm:$0xf]
        %v1120 = vld [vmem:[#allocation3 + $0x5c] sm:$0xf]
        %v1121 = vld [vmem:[#allocation3 + $0x60] sm:$0xf]
        %v1122 = vld [vmem:[#allocation3 + $0x64] sm:$0xf]
        %v1123 = vld [vmem:[#allocation3 + $0x68] sm:$0xf]
        %v1124 = vld [vmem:[#allocation3 + $0x6c] sm:$0xf]
        %v1125 = vld [vmem:[#allocation3 + $0x70] sm:$0xf]
        %v1126 = vld [vmem:[#allocation3 + $0x74] sm:$0xf]
        %v1127 = vld [vmem:[#allocation3 + $0x78] sm:$0xf]
        %v1128 = vld [vmem:[#allocation3 + $0x7c] sm:$0xf]
        %v1129 = vld [vmem:[#allocation3 + $0x80] sm:$0xf]
        %v1130 = vld [vmem:[#allocation3 + $0x84] sm:$0xf]
        %v1131 = vld [vmem:[#allocation3 + $0x88] sm:$0xf]
        %v1132 = vld [vmem:[#allocation3 + $0x8c] sm:$0xf]
        %v1133 = vld [vmem:[%s10] sm:$0x1]
        %v1135 = vlaneseq
        %v1136 = vshrl.u32 %v1135, 7
        %v1137 = vsub.s32 0, %v1136
        %v1138 = vrot.slane %v1133, %v1137
        %v1176 = vunpack.c.l.b16 %v1097
        %v1177 = vunpack.c.l.b16 %v1098
        %v1178 = vunpack.c.l.b16 %v1099
        %v1179 = vunpack.c.l.b16 %v1100
        %v1180 = vunpack.c.l.b16 %v1101
        %v1181 = vunpack.c.l.b16 %v1102
        %v1182 = vunpack.c.l.b16 %v1103
        %v1183 = vunpack.c.l.b16 %v1104
        %v1184 = vunpack.c.l.b16 %v1105
        %v1185 = vunpack.c.l.b16 %v1106
        %v1186 = vunpack.c.l.b16 %v1107
        %v1187 = vunpack.c.l.b16 %v1108
        %v1188 = vunpack.c.l.b16 %v1109
        %v1189 = vunpack.c.l.b16 %v1110
        %v1190 = vunpack.c.l.b16 %v1111
        %v1191 = vunpack.c.l.b16 %v1112
        %v1192 = vunpack.c.l.b16 %v1113
        %v1193 = vunpack.c.l.b16 %v1114
        %v1194 = vunpack.c.l.b16 %v1115
        %v1195 = vunpack.c.l.b16 %v1116
        %v1196 = vunpack.c.l.b16 %v1117
        %v1197 = vunpack.c.l.b16 %v1118
        %v1198 = vunpack.c.l.b16 %v1119
        %v1199 = vunpack.c.l.b16 %v1120
        %v1200 = vunpack.c.l.b16 %v1121
        %v1201 = vunpack.c.l.b16 %v1122
        %v1202 = vunpack.c.l.b16 %v1123
        %v1203 = vunpack.c.l.b16 %v1124
        %v1204 = vunpack.c.l.b16 %v1125
        %v1205 = vunpack.c.l.b16 %v1126
        %v1206 = vunpack.c.l.b16 %v1127
        %v1207 = vunpack.c.l.b16 %v1128
        %v1208 = vunpack.c.l.b16 %v1129
        %v1209 = vunpack.c.l.b16 %v1130
        %v1210 = vunpack.c.l.b16 %v1131
        %v1211 = vunpack.c.l.b16 %v1132
        %v1212 = vpack.c.b16 %v1177, %v1176
        %v1213 = vpack.c.b16 %v1179, %v1178
        %v1214 = vpack.c.b16 %v1181, %v1180
        %v1215 = vpack.c.b16 %v1183, %v1182
        %v1216 = vpack.c.b16 %v1185, %v1184
        %v1217 = vpack.c.b16 %v1187, %v1186
        %v1218 = vpack.c.b16 %v1189, %v1188
        %v1219 = vpack.c.b16 %v1191, %v1190
        %v1220 = vpack.c.b16 %v1193, %v1192
        %v1221 = vpack.c.b16 %v1195, %v1194
        %v1222 = vpack.c.b16 %v1197, %v1196
        %v1223 = vpack.c.b16 %v1199, %v1198
        %v1224 = vpack.c.b16 %v1201, %v1200
        %v1225 = vpack.c.b16 %v1203, %v1202
        %v1226 = vpack.c.b16 %v1205, %v1204
        %v1227 = vpack.c.b16 %v1207, %v1206
        %v1228 = vpack.c.b16 %v1209, %v1208
        %v1229 = vpack.c.b16 %v1211, %v1210
        %v1249 = vsel %vm498, %v1079, 0
        %1251 = vmatprep.subr.bf16.mxu0 0
        %1252 = vmatpush1.bf16.msra.mxu0 %v1219
        %1253 = vmatprep.subr.bf16.mxu0 0
        %1254 = vmatpush1.bf16.msra.mxu0 %v1218
        %1255 = vmatprep.subr.bf16.mxu0 0
        %1256 = vmatpush1.bf16.msra.mxu0 %v1217
        %1257 = vmatprep.subr.bf16.mxu0 0
        %1258 = vmatpush1.bf16.msra.mxu0 %v1216
        %1259 = vmatprep.subr.bf16.mxu0 0
        %1260 = vmatpush1.bf16.msra.mxu0 %v1215
        %1261 = vmatprep.subr.bf16.mxu0 0
        %1262 = vmatpush1.bf16.msra.mxu0 %v1214
        %1263 = vmatprep.subr.bf16.mxu0 0
        %1264 = vmatpush1.bf16.msra.mxu0 %v1213
        %1265 = vmatprep.subr.bf16.mxu0 0
        %1266 = vmatpush1.bf16.msra.mxu0 %v1212
        %1267 = vmatprep.subr.bf16.mxu0 0
        %1268 = vmatpush2.bf16.msra.mxu0 %v1227
        %1269 = vmatprep.subr.bf16.mxu0 0
        %1270 = vmatpush2.bf16.msra.mxu0 %v1226
        %1271 = vmatprep.subr.bf16.mxu0 0
        %1272 = vmatpush2.bf16.msra.mxu0 %v1225
        %1273 = vmatprep.subr.bf16.mxu0 0
        %1274 = vmatpush2.bf16.msra.mxu0 %v1224
        %1275 = vmatprep.subr.bf16.mxu0 0
        %1276 = vmatpush2.bf16.msra.mxu0 %v1223
        %1277 = vmatprep.subr.bf16.mxu0 0
        %1278 = vmatpush2.bf16.msra.mxu0 %v1222
        %1279 = vmatprep.subr.bf16.mxu0 0
        %1280 = vmatpush2.bf16.msra.mxu0 %v1221
        %1281 = vmatprep.subr.bf16.mxu0 0
        %1282 = vmatpush2.bf16.msra.mxu0 %v1220
        %1283 = vmatprep.mubr.bf16.mxu0 %v1095
        %1284 = vmatmul.mubr.bf16.gmra.mxu0 %v1087
        %v1285 = vpop.f32.mrf.mxu0
        %v1286 = vadd.f32 %v1138, %v1285
        %v1287 = vpop.f32.mrf.mxu0
        %v1288 = vpop.f32.mrf.mxu0
        %v1289 = vadd.f32 %v1138, %v1288
        %v1290 = vpop.f32.mrf.mxu0
        %1291 = vdwg.mxu0
        %1292 = vmatprep.subr.bf16.mxu0 0
        %1293 = vmatpush1.bf16.msra.mxu0 0
        %1294 = vmatprep.subr.bf16.mxu0 0
        %1295 = vmatpush1.bf16.msra.mxu0 0
        %1296 = vmatprep.subr.bf16.mxu0 0
        %1297 = vmatpush1.bf16.msra.mxu0 0
        %1298 = vmatprep.subr.bf16.mxu0 0
        %1299 = vmatpush1.bf16.msra.mxu0 0
        %1300 = vmatprep.subr.bf16.mxu0 0
        %1301 = vmatpush1.bf16.msra.mxu0 0
        %1302 = vmatprep.subr.bf16.mxu0 0
        %1303 = vmatpush1.bf16.msra.mxu0 0
        %1304 = vmatprep.subr.bf16.mxu0 0
        %1305 = vmatpush1.bf16.msra.mxu0 %v1229
        %1306 = vmatprep.subr.bf16.mxu0 0
        %1307 = vmatpush1.bf16.msra.mxu0 %v1228
        %1308 = vmatprep.subr.bf16.mxu0 0
        %1309 = vmatpush2.bf16.msra.mxu0 0
        %1310 = vmatprep.subr.bf16.mxu0 0
        %1311 = vmatpush2.bf16.msra.mxu0 0
        %1312 = vmatprep.subr.bf16.mxu0 0
        %1313 = vmatpush2.bf16.msra.mxu0 0
        %1314 = vmatprep.subr.bf16.mxu0 0
        %1315 = vmatpush2.bf16.msra.mxu0 0
        %1316 = vmatprep.subr.bf16.mxu0 0
        %1317 = vmatpush2.bf16.msra.mxu0 0
        %1318 = vmatprep.subr.bf16.mxu0 0
        %1319 = vmatpush2.bf16.msra.mxu0 0
        %1320 = vmatprep.subr.bf16.mxu0 0
        %1321 = vmatpush2.bf16.msra.mxu0 0
        %1322 = vmatprep.subr.bf16.mxu0 0
        %1323 = vmatpush2.bf16.msra.mxu0 0
        %1324 = vmatprep.mubr.bf16.mxu0 0
        %1325 = vmatmul.mubr.bf16.gmra.mxu0 %v1249
        %v1326 = vpop.f32.mrf.mxu0
        %v1327 = vadd.f32 %v1286, %v1326
        %v1328 = vpop.f32.mrf.mxu0
        %v1329 = vpop.f32.mrf.mxu0
        %v1330 = vadd.f32 %v1289, %v1329
        %v1331 = vpop.f32.mrf.mxu0
        %1332 = vdwg.mxu0
        %v1333 = vmul.f32 %v1327, 0.5
        %v1334 = vmul.f32 %v1330, 0.5
        %v1335 = vmul.f32 %v1327, 0.70710677
        %v1336 = vmul.f32 %v1330, 0.70710677
        %v1337 = verf.f32.pop %v1335
        %v1338 = verf.f32.pop %v1336
        %v1339 = vadd.f32 %v1337, 1.0
        %v1340 = vadd.f32 %v1338, 1.0
        %v1341 = vmul.f32 %v1333, %v1339
        %v1342 = vmul.f32 %v1334, %v1340
        %v1343 = vpack.c.bf16 %v1342, %v1341
        %v1344 = vld [vmem:[%s11] sm:$0xf]
        %v1345 = vld [vmem:[%s11 + $0x4] sm:$0xf]
        %v1346 = vld [vmem:[%s11 + $0x8] sm:$0xf]
        %v1347 = vld [vmem:[%s11 + $0xc] sm:$0xf]
        %v1348 = vld [vmem:[%s11 + $0x10] sm:$0xf]
        %v1349 = vld [vmem:[%s11 + $0x14] sm:$0xf]
        %v1350 = vld [vmem:[%s11 + $0x18] sm:$0xf]
        %v1351 = vld [vmem:[%s11 + $0x1c] sm:$0xf]
        %v1352 = vld [vmem:[%s11 + $0x20] sm:$0xf]
        %v1353 = vld [vmem:[%s11 + $0x24] sm:$0xf]
        %v1354 = vld [vmem:[%s11 + $0x28] sm:$0xf]
        %v1355 = vld [vmem:[%s11 + $0x2c] sm:$0xf]
        %v1356 = vld [vmem:[%s11 + $0x30] sm:$0xf]
        %v1357 = vld [vmem:[%s11 + $0x34] sm:$0xf]
        %v1358 = vld [vmem:[%s11 + $0x38] sm:$0xf]
        %v1359 = vld [vmem:[%s11 + $0x3c] sm:$0xf]
        %v1360 = vld [vmem:[%s12] sm:$0x1]
        %v1362 = vlaneseq
        %v1363 = vshrl.u32 %v1362, 7
        %v1364 = vsub.s32 0, %v1363
        %v1365 = vrot.slane %v1360, %v1364
        %v1383 = vunpack.c.l.b16 %v1344
        %v1384 = vunpack.c.l.b16 %v1345
        %v1385 = vunpack.c.l.b16 %v1346
        %v1386 = vunpack.c.l.b16 %v1347
        %v1387 = vunpack.c.l.b16 %v1348
        %v1388 = vunpack.c.l.b16 %v1349
        %v1389 = vunpack.c.l.b16 %v1350
        %v1390 = vunpack.c.l.b16 %v1351
        %v1391 = vunpack.c.l.b16 %v1352
        %v1392 = vunpack.c.l.b16 %v1353
        %v1393 = vunpack.c.l.b16 %v1354
        %v1394 = vunpack.c.l.b16 %v1355
        %v1395 = vunpack.c.l.b16 %v1356
        %v1396 = vunpack.c.l.b16 %v1357
        %v1397 = vunpack.c.l.b16 %v1358
        %v1398 = vunpack.c.l.b16 %v1359
        %v1399 = vpack.c.b16 %v1384, %v1383
        %v1400 = vpack.c.b16 %v1386, %v1385
        %v1401 = vpack.c.b16 %v1388, %v1387
        %v1402 = vpack.c.b16 %v1390, %v1389
        %v1403 = vpack.c.b16 %v1392, %v1391
        %v1404 = vpack.c.b16 %v1394, %v1393
        %v1405 = vpack.c.b16 %v1396, %v1395
        %v1406 = vpack.c.b16 %v1398, %v1397
        %1415 = vmatprep.subr.bf16.mxu0 0
        %1416 = vmatpush1.bf16.msra.mxu0 %v1406
        %1417 = vmatprep.subr.bf16.mxu0 0
        %1418 = vmatpush1.bf16.msra.mxu0 %v1405
        %1419 = vmatprep.subr.bf16.mxu0 0
        %1420 = vmatpush1.bf16.msra.mxu0 %v1404
        %1421 = vmatprep.subr.bf16.mxu0 0
        %1422 = vmatpush1.bf16.msra.mxu0 %v1403
        %1423 = vmatprep.subr.bf16.mxu0 0
        %1424 = vmatpush1.bf16.msra.mxu0 %v1402
        %1425 = vmatprep.subr.bf16.mxu0 0
        %1426 = vmatpush1.bf16.msra.mxu0 %v1401
        %1427 = vmatprep.subr.bf16.mxu0 0
        %1428 = vmatpush1.bf16.msra.mxu0 %v1400
        %1429 = vmatprep.subr.bf16.mxu0 0
        %1430 = vmatpush1.bf16.msra.mxu0 %v1399
        %1431 = vmatprep.subr.bf16.mxu0 0
        %1432 = vmatpush2.bf16.msra.mxu0 0
        %1433 = vmatprep.subr.bf16.mxu0 0
        %1434 = vmatpush2.bf16.msra.mxu0 0
        %1435 = vmatprep.subr.bf16.mxu0 0
        %1436 = vmatpush2.bf16.msra.mxu0 0
        %1437 = vmatprep.subr.bf16.mxu0 0
        %1438 = vmatpush2.bf16.msra.mxu0 0
        %1439 = vmatprep.subr.bf16.mxu0 0
        %1440 = vmatpush2.bf16.msra.mxu0 0
        %1441 = vmatprep.subr.bf16.mxu0 0
        %1442 = vmatpush2.bf16.msra.mxu0 0
        %1443 = vmatprep.subr.bf16.mxu0 0
        %1444 = vmatpush2.bf16.msra.mxu0 0
        %1445 = vmatprep.subr.bf16.mxu0 0
        %1446 = vmatpush2.bf16.msra.mxu0 0
        %1447 = vmatprep.mubr.bf16.mxu0 0
        %1448 = vmatmul.mubr.bf16.gmra.mxu0 %v1343
        %v1449 = vpop.f32.mrf.mxu0
        %v1450 = vadd.f32 %v1365, %v1449
        %v1451 = vpop.f32.mrf.mxu0
        %v1452 = vpop.f32.mrf.mxu0
        %v1453 = vadd.f32 %v1365, %v1452
        %v1454 = vpop.f32.mrf.mxu0
        %1455 = vdwg.mxu0
        %v1456 = vadd.f32 %v934, %v1450
        %v1457 = vadd.f32 %v935, %v1453
        %v1458 = vmul.f32 %v1456, %v927
        %v1459 = vmul.f32 %v1457, %v932
        %1460 = vst.msk [vmem:[%s476] sm:$0xff] %vm498, %v1458
        %1461 = vst.msk [vmem:[%s476 + $0x8] sm:$0xff] %vm498, %v1459
        %s1462 = sand.u32 %s324, 1
        %s1463 = scalar_lea.sflag [#allocation5], %s1462
        %s1464 = sand.u32 %s324, 1
        %s1465 = smul.addr %s1464, 16
        %s1466 = scalar_lea.vmem [#allocation6], %s1465
        // Predicated region
        $region77: #{tpu_custom_call.1} parent=71 // pred_check
          %p1467 = pneg %p334
        $region78: #{tpu_custom_call.1} parent=71 // pred_check_branch
          %1469 = sbr.rel (%p1467) target = $region80
        $region79: #{tpu_custom_call.1} parent=71 // pred_region
          %s1470 = smul.u32 2, %s28
          %s1472 = ssub.s32 256, 256
          %1473 = vsyncadd %s1463, %s1472
          %s1474 = smul.addr %s1470, 128
          %s1475 = scalar_lea.hbm %s13, %s1474
          %s1476 = sshll.u32 %s1466, 4
          %s1477 = int_to_ptr.vmem [resolvable:$true] %s1476
          %1482 = dma.vmem_to_hbm [thread:$0]  %s1477, 256, %s1475, %s1463, 128, 128, 8
        $region80: #{tpu_custom_call.1} parent=71 // pred_fallthru
          _
      $region72: #{tpu_custom_call.1} parent=5 // pred_fallthru
        _
      %p1483 = scmp.le.s32.totalorder 2, %s23
      // Predicated region
      $region81: #{tpu_custom_call.1} parent=5 // pred_check
        %p1484 = pneg %p1483
      $region82: #{tpu_custom_call.1} parent=5 // pred_check_branch
        %1486 = sbr.rel (%p1484) target = $region84
      $region83: #{tpu_custom_call.1} parent=5 // pred_region
        %s1487 = ssub.s32 %s23, 2
        // Predicated region
        $region85: #{tpu_custom_call.1} parent=83 // pred_check
          %p1488 = pneg %p340
        $region86: #{tpu_custom_call.1} parent=83 // pred_check_branch
          %1490 = sbr.rel (%p1488) target = $region88
        $region87: #{tpu_custom_call.1} parent=83 // pred_region
          %s1491 = sand.u32 %s325, 1
          %s1492 = scalar_lea.sflag [#allocation5], %s1491
          %s1493 = sand.u32 %s325, 1
          %s1494 = smul.addr %s1493, 16
          %s1495 = scalar_lea.vmem [#allocation6], %s1494
          %1496 = dma.done %s1492, 256
        $region88: #{tpu_custom_call.1} parent=83 // pred_fallthru
          _
      $region84: #{tpu_custom_call.1} parent=5 // pred_fallthru
        _
    $region6: #{tpu_custom_call.1} parent=1 // loop_footer
      %s27 = sadd.s32 1, %s23
    $region7: #{tpu_custom_call.1} parent=1 // loop_footer_branch
      %22 = sbr.rel target = $region3
    $region8: #{tpu_custom_call.1} parent=1 // loop_exit
      _
    %1497 = vsyncpa [#allocation4], 1
    %s1498 = scalar_lea.sflag [#allocation4], 1
    %1499 = vsyncpa %s1498, 1
    %1500 = vsyncpa [#allocation5], 1
    %s1501 = scalar_lea.sflag [#allocation5], 1
    %1502 = vsyncpa %s1501, 1

</llo_original>
